<compile_context>
chip_gen: v6e
topology: v6e:2x2x1
jax: 0.10.0
libtpu: 0.0.40
codegen_flags: <defaults>
</compile_context>

<pallas_src>
import functools

import jax
import jax.numpy as jnp
from jax.experimental import pallas as pl
from jax.experimental.pallas import tpu as pltpu


def _round_up(x, m):
    return (x + m - 1) // m * m


# ----------------------------------------------------------------------------
# Pallas kernel
# ----------------------------------------------------------------------------
def _roberta_embeddings_kernel(
    ids_smem,                       # scalar prefetch: flat word ids (SMEM)
    word_hbm,                       # (V, H) word table, left in HBM
    pos_tbl_ref, type_tbl_ref,      # small tables, VMEM resident (f32)
    gamma_ref, beta_ref,            # (1, H) LayerNorm params, VMEM (f32)
    pos_ids_ref, type_ids_ref,      # (TN, 1) int32, blocked VMEM
    out_ref,                        # (TN, H) output tile
    wrows0, wrows1,                 # (TC, H) word-row double buffers
    sem0, sem1,                     # one DMA semaphore per buffer
    *, eps, tn, tc):
    i = pl.program_id(0)
    base = i * tn
    n_chunks = tn // tc
    h = out_ref.shape[1]
    rp = pos_tbl_ref.shape[0]
    n_type_rows = type_tbl_ref.shape[0]
    wbufs = (wrows0, wrows1)
    sems = (sem0, sem1)

    def issue_chunk(c, slot):
        # One HBM->VMEM row DMA per token of chunk `c`.  Statically unrolled so
        # the descriptor pushes interleave with the surrounding vector work.
        buf, sem = wbufs[slot], sems[slot]
        off = c * tc
        for t in range(tc):
            wid = ids_smem[base + off + t]
            pltpu.make_async_copy(word_hbm.at[pl.ds(wid, 1), :],
                                  buf.at[pl.ds(t, 1), :],
                                  sem).start()

    def drain_chunk(slot):
        # Every row copy has the identical (1, H) shape, so the waits use a
        # FIXED descriptor: only the transfer size matters for semaphore
        # accounting, and we avoid SMEM id reads after a .wait().
        buf, sem = wbufs[slot], sems[slot]
        for _ in range(tc):
            pltpu.make_async_copy(word_hbm.at[pl.ds(0, 1), :],
                                  buf.at[pl.ds(0, 1), :],
                                  sem).wait()

    # Hoisted invariants (avoid re-broadcasting inside the chunk loop).
    gamma = gamma_ref[...]
    beta = beta_ref[...]
    pos_tbl = pos_tbl_ref[...]
    iota = jax.lax.broadcasted_iota(jnp.int32, (tc, rp), 1)

    # Prime the pipeline with chunk 0's word-row DMAs.
    issue_chunk(0, 0)

    for c in range(n_chunks):               # static loop: slots are Python ints
        slot = c & 1
        if c + 1 < n_chunks:                # prefetch next chunk's word rows
            issue_chunk(c + 1, 1 - slot)

        lo, hi = c * tc, (c + 1) * tc

        # --- small-table gathers (vectorized; overlaps the in-flight DMAs) ---
        pos_col = pos_ids_ref[lo:hi, :]                       # (tc, 1) int32
        onehot = (iota == pos_col).astype(jnp.float32)        # (tc, rp)
        small = jnp.dot(onehot, pos_tbl,
                        preferred_element_type=jnp.float32)   # (tc, h) on MXU
        typ_col = type_ids_ref[lo:hi, :]                      # (tc, 1) int32
        for r in range(n_type_rows):                          # tiny type vocab
            small = jnp.where(typ_col == r,
                              small + type_tbl_ref[r:r + 1, :], small)

        # --- word rows: wait for this chunk's DMAs, then fuse ---
        drain_chunk(slot)
        emb = wbufs[slot][...].astype(jnp.float32) + small

        # --- LayerNorm (two-pass, f32 statistics) ---
        mean = jnp.mean(emb, axis=-1, keepdims=True)
        centered = emb - mean
        var = jnp.mean(centered * centered, axis=-1, keepdims=True)
        normed = centered * jax.lax.rsqrt(var + eps)
        out_ref[lo:hi, :] = (normed * gamma + beta).astype(out_ref.dtype)

    # TODO(synk): training-mode dropout (pltpu.prng_random_bits mask) not
    # implemented; dropout is identity at inference.


# ----------------------------------------------------------------------------
# Wrapper
# ----------------------------------------------------------------------------
def roberta_embeddings(input_ids, params, *, padding_idx, eps,
                       token_type_ids=None, position_ids=None,
                       tile_tokens=256, chunk_tokens=64,
                       out_dtype=jnp.float32):
    """Forward pass matching RobertaEmbeddings (eval mode)."""
    b, s = input_ids.shape
    word = params["word_embeddings"]                 # may be f32 or bf16
    h = word.shape[1]

    # --- RoBERTa position-id tweak (JAX glue, index arithmetic only) ---
    if position_ids is None:
        mask = (input_ids != padding_idx).astype(jnp.int32)
        position_ids = jnp.cumsum(mask, axis=1) * mask + padding_idx
    type_tbl = params.get("token_type_embeddings", None)
    if type_tbl is None:                             # config.type_vocab_size == 0
        type_tbl = jnp.zeros((1, h), jnp.float32)
        token_type_ids = jnp.zeros_like(input_ids)
    elif token_type_ids is None:
        token_type_ids = jnp.zeros_like(input_ids)

    n = b * s
    # Compile-time tile geometry (tile = grid step, chunk = DMA pipeline stage).
    chunk = max(8, _round_up(min(int(chunk_tokens), n), 8))
    tile = max(chunk, _round_up(min(int(tile_tokens), n), chunk))
    n_tiles = pl.cdiv(n, tile)
    n_pad = n_tiles * tile

    def flat_pad(x, fill):
        x = x.reshape(n).astype(jnp.int32)
        if n_pad > n:
            x = jnp.pad(x, (0, n_pad - n), constant_values=fill)
        return x

    # Padded ids must remain valid table indices (padding_idx rows are zeroed).
    ids_flat = flat_pad(input_ids, padding_idx)
    pos_2d = flat_pad(position_ids, padding_idx).reshape(n_pad, 1)
    typ_2d = flat_pad(token_type_ids, 0).reshape(n_pad, 1)

    # Small tables / LN params: f32, VMEM resident.  Pad pos-table rows to a
    # multiple of 8 (sublane aligned K for the one-hot matmul).
    pos_tbl = params["position_embeddings"].astype(jnp.float32)
    rp = pos_tbl.shape[0]
    rp_pad = _round_up(rp, 8)
    if rp_pad > rp:
        pos_tbl = jnp.pad(pos_tbl, ((0, rp_pad - rp), (0, 0)))
    type_tbl = type_tbl.astype(jnp.float32)
    gamma = params["ln_gamma"].reshape(1, h).astype(jnp.float32)
    beta = params["ln_beta"].reshape(1, h).astype(jnp.float32)

    vmem = pl.BlockSpec(memory_space=pltpu.MemorySpace.VMEM)
    hbm = pl.BlockSpec(memory_space=pl.ANY)            # word table: stays in HBM
    blk_ids = pl.BlockSpec((tile, 1), lambda i, *_: (i, 0))

    kernel = functools.partial(_roberta_embeddings_kernel,
                               eps=float(eps), tn=tile, tc=chunk)

    grid_spec = pltpu.PrefetchScalarGridSpec(
        num_scalar_prefetch=1,                         # word ids -> SMEM
        grid=(n_tiles,),
        in_specs=[hbm, vmem, vmem, vmem, vmem, blk_ids, blk_ids],
        out_specs=pl.BlockSpec((tile, h), lambda i, *_: (i, 0)),
        scratch_shapes=[
            pltpu.VMEM((chunk, h), word.dtype),        # word-row buffer, slot 0
            pltpu.VMEM((chunk, h), word.dtype),        # word-row buffer, slot 1
            pltpu.SemaphoreType.DMA,                   # row-DMA sem, slot 0
            pltpu.SemaphoreType.DMA,                   # row-DMA sem, slot 1
        ],
    )

    # VMEM budget (double-buffered out block + resident tables + scratch +
    # LN/one-hot temporaries); cap at 64 MiB so large tiles fit v7x.
    wb = word.dtype.itemsize
    ob = jnp.dtype(out_dtype).itemsize
    est = (2 * tile * h * ob
           + 4 * tile * 4
           + (rp_pad + type_tbl.shape[0] + 2) * h * 4
           + 2 * chunk * h * wb
           + chunk * rp_pad * 4
           + 8 * chunk * h * 4)
    vmem_limit = int(min(64 << 20, max(32 << 20, 2 * est)))

    # Memory-bound gather, not a big matmul: tell XLA the truth.
    cost = pl.CostEstimate(
        flops=int(n_pad * (2 * rp_pad * h + 10 * h)),
        transcendentals=int(n_pad),
        bytes_accessed=int(n_pad * h * (wb + ob) + 3 * n_pad * 4
                           + (rp_pad + type_tbl.shape[0]) * h * 4),
    )

    out_flat = pl.pallas_call(
        kernel,
        out_shape=jax.ShapeDtypeStruct((n_pad, h), out_dtype),
        grid_spec=grid_spec,
        compiler_params=pltpu.CompilerParams(
            dimension_semantics=("parallel",),         # 2 TCs on v7x; no-op v5e/v6e
            vmem_limit_bytes=vmem_limit),
        cost_estimate=cost,
    )(ids_flat, word, pos_tbl, type_tbl, gamma, beta, pos_2d, typ_2d)

    return out_flat[:n].reshape(b, s, h)


# ----------------------------------------------------------------------------
# Pure-JAX reference (in-script correctness check)
# ----------------------------------------------------------------------------
def roberta_embeddings_ref(input_ids, params, *, padding_idx, eps,
                           token_type_ids=None, position_ids=None):
    if position_ids is None:
        mask = (input_ids != padding_idx).astype(jnp.int32)
        position_ids = jnp.cumsum(mask, axis=1) * mask + padding_idx
    if token_type_ids is None:
        token_type_ids = jnp.zeros_like(input_ids)
    emb = (jnp.take(params["word_embeddings"].astype(jnp.float32),
                    input_ids, axis=0)
           + jnp.take(params["position_embeddings"].astype(jnp.float32),
                      position_ids, axis=0)
           + jnp.take(params["token_type_embeddings"].astype(jnp.float32),
                      token_type_ids, axis=0))
    mean = jnp.mean(emb, axis=-1, keepdims=True)
    var = jnp.mean((emb - mean) ** 2, axis=-1, keepdims=True)
    normed = (emb - mean) * jax.lax.rsqrt(var + eps)
    return (normed * params["ln_gamma"].reshape(1, -1)
            + params["ln_beta"].reshape(1, -1))


# ----------------------------------------------------------------------------
# Deterministic parameter init (shapes per RobertaEmbeddings.__init__)
# ----------------------------------------------------------------------------
def init_params(key, *, vocab_size, hidden_size, max_position_embeddings,
                type_vocab_size, padding_idx):
    k_w, k_p, k_t = jax.random.split(key, 3)
    word = 0.02 * jax.random.normal(k_w, (vocab_size, hidden_size), jnp.float32)
    pos = 0.02 * jax.random.normal(
        k_p, (padding_idx + max_position_embeddings + 1, hidden_size),
        jnp.float32)
    typ = 0.02 * jax.random.normal(k_t, (type_vocab_size, hidden_size),
                                   jnp.float32)
    # nn.Embedding(padding_idx=...) zeros the padding row.
    word = word.at[padding_idx].set(0.0)
    pos = pos.at[padding_idx].set(0.0)
    return {
        "word_embeddings": word,
        "position_embeddings": pos,
        "token_type_embeddings": typ,
        "ln_gamma": jnp.ones((1, hidden_size), jnp.float32),
        "ln_beta": jnp.zeros((1, hidden_size), jnp.float32),
    }


if __name__ == "__main__":
    # Small config: vocab=50, hidden=128, max_pos=20, type_vocab=2, pad=1.
    VOCAB, HIDDEN, MAX_POS, TYPE_VOCAB, PAD = 50, 128, 20, 2, 1
    EPS = 1e-12
    B, S = 2, 16

    key = jax.random.PRNGKey(0)
    k_param, k_ids, k_typ = jax.random.split(key, 3)
    params = init_params(k_param, vocab_size=VOCAB, hidden_size=HIDDEN,
                         max_position_embeddings=MAX_POS,
                         type_vocab_size=TYPE_VOCAB, padding_idx=PAD)

    input_ids = jax.random.randint(k_ids, (B, S), 2, VOCAB, dtype=jnp.int32)
    # Padding tokens at the end of the second sequence.
    input_ids = input_ids.at[1, 12:].set(PAD)
    token_type_ids = jax.random.randint(k_typ, (B, S), 0, TYPE_VOCAB,
                                        dtype=jnp.int32)

    # tile=16, chunk=8 -> 2 grid tiles x 2 chunks: exercises grid pipelining,
    # both double-buffer slots and the cross-chunk prefetch path.
    out = roberta_embeddings(input_ids, params, padding_idx=PAD, eps=EPS,
                             token_type_ids=token_type_ids,
                             tile_tokens=16, chunk_tokens=8)
    jax.block_until_ready(out)
    assert out.shape == (B, S, HIDDEN) and out.dtype == jnp.float32

    ref = roberta_embeddings_ref(input_ids, params, padding_idx=PAD, eps=EPS,
                                 token_type_ids=token_type_ids)
    assert jnp.allclose(out, ref, rtol=1e-3, atol=1e-3), \
        float(jnp.max(jnp.abs(out - ref)))

    # bf16 word table: halves the dominant HBM gather traffic (review item).
    params_bf16 = dict(params)
    params_bf16["word_embeddings"] = params["word_embeddings"].astype(
        jnp.bfloat16)
    out16 = roberta_embeddings(input_ids, params_bf16, padding_idx=PAD, eps=EPS,
                               token_type_ids=token_type_ids,
                               tile_tokens=16, chunk_tokens=8)
    jax.block_until_ready(out16)
    ref16 = roberta_embeddings_ref(input_ids, params_bf16, padding_idx=PAD,
                                   eps=EPS, token_type_ids=token_type_ids)
    assert jnp.allclose(out16, ref16, rtol=5e-3, atol=5e-3), \
        float(jnp.max(jnp.abs(out16 - ref16)))

    print("KERNEL_OK")
</pallas_src>

<mosaic_0001>
module attributes {stable_mosaic.version = 11 : i64} {
  func.func @_roberta_embeddings_kernel(%arg0: i32, %arg1: memref<32xi32, #tpu.memory_space<smem>>, %arg2: memref<50x128xf32, #tpu.memory_space<any>>, %arg3: memref<24x128xf32, #tpu.memory_space<vmem>>, %arg4: memref<2x128xf32, #tpu.memory_space<vmem>>, %arg5: memref<1x128xf32, #tpu.memory_space<vmem>>, %arg6: memref<1x128xf32, #tpu.memory_space<vmem>>, %arg7: memref<16x1xi32, #tpu.memory_space<vmem>>, %arg8: memref<16x1xi32, #tpu.memory_space<vmem>>, %arg9: memref<16x128xf32, #tpu.memory_space<vmem>>, %arg10: memref<8x128xf32, #tpu.memory_space<vmem>>, %arg11: memref<8x128xf32, #tpu.memory_space<vmem>>, %arg12: memref<!tpu.dma_semaphore, #tpu.memory_space<semaphore_mem>>, %arg13: memref<!tpu.dma_semaphore, #tpu.memory_space<semaphore_mem>>) attributes {dimension_semantics = [#tpu.dimension_semantics<parallel>], iteration_bounds = array<i64: 2>, scalar_prefetch = 1 : i64, scratch_operands = 4 : i64, tpu.core_type = #tpu.core_type<tc>, window_params = [{}, {pipeline_mode = #tpu.pipeline_mode<synchronous>, transform_indices = @transform_1, window_bounds = array<i64: 24, 128>}, {pipeline_mode = #tpu.pipeline_mode<synchronous>, transform_indices = @transform_2, window_bounds = array<i64: 2, 128>}, {pipeline_mode = #tpu.pipeline_mode<synchronous>, transform_indices = @transform_3, window_bounds = array<i64: 1, 128>}, {pipeline_mode = #tpu.pipeline_mode<synchronous>, transform_indices = @transform_4, window_bounds = array<i64: 1, 128>}, {transform_indices = @transform_5, window_bounds = array<i64: 16, 1>}, {transform_indices = @transform_6, window_bounds = array<i64: 16, 1>}, {transform_indices = @transform_7, window_bounds = array<i64: 16, 128>}]} {
    %c16_i32 = arith.constant 16 : i32
    %0 = arith.muli %arg0, %c16_i32 : i32
    %c0 = arith.constant 0 : index
    %c0_0 = arith.constant 0 : index
    %1 = vector.load %arg5[%c0, %c0_0] : memref<1x128xf32, #tpu.memory_space<vmem>>, vector<1x128xf32>
    %c0_1 = arith.constant 0 : index
    %c0_2 = arith.constant 0 : index
    %2 = vector.load %arg6[%c0_1, %c0_2] : memref<1x128xf32, #tpu.memory_space<vmem>>, vector<1x128xf32>
    %c0_3 = arith.constant 0 : index
    %c0_4 = arith.constant 0 : index
    %3 = vector.load %arg3[%c0_3, %c0_4] : memref<24x128xf32, #tpu.memory_space<vmem>>, vector<24x128xf32>
    %4 = tpu.iota {dimensions = array<i32: 1>} : vector<8x24xi32>
    %c0_i32 = arith.constant 0 : i32
    %5 = arith.addi %0, %c0_i32 : i32
    %c0_i32_5 = arith.constant 0 : i32
    %6 = arith.addi %5, %c0_i32_5 : i32
    %7 = arith.index_cast %6 : i32 to index
    %8 = memref.load %arg1[%7] : memref<32xi32, #tpu.memory_space<smem>>
    %c0_i32_6 = arith.constant 0 : i32
    %9 = tpu.memref_slice %arg2[%8, %c0_i32_6] : memref<50x128xf32, #tpu.memory_space<any>> -> memref<1x128xf32, #tpu.memory_space<any>>
    %c0_i32_7 = arith.constant 0 : i32
    %c0_i32_8 = arith.constant 0 : i32
    %10 = tpu.memref_slice %arg10[%c0_i32_7, %c0_i32_8] : memref<8x128xf32, #tpu.memory_space<vmem>> -> memref<1x128xf32, #tpu.memory_space<vmem>>
    tpu.enqueue_dma source(%9 : memref<1x128xf32, #tpu.memory_space<any>>) target(%10 : memref<1x128xf32, #tpu.memory_space<vmem>>) target_semaphore(%arg12 : memref<!tpu.dma_semaphore, #tpu.memory_space<semaphore_mem>>)
    %c0_i32_9 = arith.constant 0 : i32
    %11 = arith.addi %0, %c0_i32_9 : i32
    %c1_i32 = arith.constant 1 : i32
    %12 = arith.addi %11, %c1_i32 : i32
    %13 = arith.index_cast %12 : i32 to index
    %14 = memref.load %arg1[%13] : memref<32xi32, #tpu.memory_space<smem>>
    %c0_i32_10 = arith.constant 0 : i32
    %15 = tpu.memref_slice %arg2[%14, %c0_i32_10] : memref<50x128xf32, #tpu.memory_space<any>> -> memref<1x128xf32, #tpu.memory_space<any>>
    %c1_i32_11 = arith.constant 1 : i32
    %c0_i32_12 = arith.constant 0 : i32
    %16 = tpu.memref_slice %arg10[%c1_i32_11, %c0_i32_12] : memref<8x128xf32, #tpu.memory_space<vmem>> -> memref<1x128xf32, #tpu.memory_space<vmem>>
    tpu.enqueue_dma source(%15 : memref<1x128xf32, #tpu.memory_space<any>>) target(%16 : memref<1x128xf32, #tpu.memory_space<vmem>>) target_semaphore(%arg12 : memref<!tpu.dma_semaphore, #tpu.memory_space<semaphore_mem>>)
    %c0_i32_13 = arith.constant 0 : i32
    %17 = arith.addi %0, %c0_i32_13 : i32
    %c2_i32 = arith.constant 2 : i32
    %18 = arith.addi %17, %c2_i32 : i32
    %19 = arith.index_cast %18 : i32 to index
    %20 = memref.load %arg1[%19] : memref<32xi32, #tpu.memory_space<smem>>
    %c0_i32_14 = arith.constant 0 : i32
    %21 = tpu.memref_slice %arg2[%20, %c0_i32_14] : memref<50x128xf32, #tpu.memory_space<any>> -> memref<1x128xf32, #tpu.memory_space<any>>
    %c2_i32_15 = arith.constant 2 : i32
    %c0_i32_16 = arith.constant 0 : i32
    %22 = tpu.memref_slice %arg10[%c2_i32_15, %c0_i32_16] : memref<8x128xf32, #tpu.memory_space<vmem>> -> memref<1x128xf32, #tpu.memory_space<vmem>>
    tpu.enqueue_dma source(%21 : memref<1x128xf32, #tpu.memory_space<any>>) target(%22 : memref<1x128xf32, #tpu.memory_space<vmem>>) target_semaphore(%arg12 : memref<!tpu.dma_semaphore, #tpu.memory_space<semaphore_mem>>)
    %c0_i32_17 = arith.constant 0 : i32
    %23 = arith.addi %0, %c0_i32_17 : i32
    %c3_i32 = arith.constant 3 : i32
    %24 = arith.addi %23, %c3_i32 : i32
    %25 = arith.index_cast %24 : i32 to index
    %26 = memref.load %arg1[%25] : memref<32xi32, #tpu.memory_space<smem>>
    %c0_i32_18 = arith.constant 0 : i32
    %27 = tpu.memref_slice %arg2[%26, %c0_i32_18] : memref<50x128xf32, #tpu.memory_space<any>> -> memref<1x128xf32, #tpu.memory_space<any>>
    %c3_i32_19 = arith.constant 3 : i32
    %c0_i32_20 = arith.constant 0 : i32
    %28 = tpu.memref_slice %arg10[%c3_i32_19, %c0_i32_20] : memref<8x128xf32, #tpu.memory_space<vmem>> -> memref<1x128xf32, #tpu.memory_space<vmem>>
    tpu.enqueue_dma source(%27 : memref<1x128xf32, #tpu.memory_space<any>>) target(%28 : memref<1x128xf32, #tpu.memory_space<vmem>>) target_semaphore(%arg12 : memref<!tpu.dma_semaphore, #tpu.memory_space<semaphore_mem>>)
    %c0_i32_21 = arith.constant 0 : i32
    %29 = arith.addi %0, %c0_i32_21 : i32
    %c4_i32 = arith.constant 4 : i32
    %30 = arith.addi %29, %c4_i32 : i32
    %31 = arith.index_cast %30 : i32 to index
    %32 = memref.load %arg1[%31] : memref<32xi32, #tpu.memory_space<smem>>
    %c0_i32_22 = arith.constant 0 : i32
    %33 = tpu.memref_slice %arg2[%32, %c0_i32_22] : memref<50x128xf32, #tpu.memory_space<any>> -> memref<1x128xf32, #tpu.memory_space<any>>
    %c4_i32_23 = arith.constant 4 : i32
    %c0_i32_24 = arith.constant 0 : i32
    %34 = tpu.memref_slice %arg10[%c4_i32_23, %c0_i32_24] : memref<8x128xf32, #tpu.memory_space<vmem>> -> memref<1x128xf32, #tpu.memory_space<vmem>>
    tpu.enqueue_dma source(%33 : memref<1x128xf32, #tpu.memory_space<any>>) target(%34 : memref<1x128xf32, #tpu.memory_space<vmem>>) target_semaphore(%arg12 : memref<!tpu.dma_semaphore, #tpu.memory_space<semaphore_mem>>)
    %c0_i32_25 = arith.constant 0 : i32
    %35 = arith.addi %0, %c0_i32_25 : i32
    %c5_i32 = arith.constant 5 : i32
    %36 = arith.addi %35, %c5_i32 : i32
    %37 = arith.index_cast %36 : i32 to index
    %38 = memref.load %arg1[%37] : memref<32xi32, #tpu.memory_space<smem>>
    %c0_i32_26 = arith.constant 0 : i32
    %39 = tpu.memref_slice %arg2[%38, %c0_i32_26] : memref<50x128xf32, #tpu.memory_space<any>> -> memref<1x128xf32, #tpu.memory_space<any>>
    %c5_i32_27 = arith.constant 5 : i32
    %c0_i32_28 = arith.constant 0 : i32
    %40 = tpu.memref_slice %arg10[%c5_i32_27, %c0_i32_28] : memref<8x128xf32, #tpu.memory_space<vmem>> -> memref<1x128xf32, #tpu.memory_space<vmem>>
    tpu.enqueue_dma source(%39 : memref<1x128xf32, #tpu.memory_space<any>>) target(%40 : memref<1x128xf32, #tpu.memory_space<vmem>>) target_semaphore(%arg12 : memref<!tpu.dma_semaphore, #tpu.memory_space<semaphore_mem>>)
    %c0_i32_29 = arith.constant 0 : i32
    %41 = arith.addi %0, %c0_i32_29 : i32
    %c6_i32 = arith.constant 6 : i32
    %42 = arith.addi %41, %c6_i32 : i32
    %43 = arith.index_cast %42 : i32 to index
    %44 = memref.load %arg1[%43] : memref<32xi32, #tpu.memory_space<smem>>
    %c0_i32_30 = arith.constant 0 : i32
    %45 = tpu.memref_slice %arg2[%44, %c0_i32_30] : memref<50x128xf32, #tpu.memory_space<any>> -> memref<1x128xf32, #tpu.memory_space<any>>
    %c6_i32_31 = arith.constant 6 : i32
    %c0_i32_32 = arith.constant 0 : i32
    %46 = tpu.memref_slice %arg10[%c6_i32_31, %c0_i32_32] : memref<8x128xf32, #tpu.memory_space<vmem>> -> memref<1x128xf32, #tpu.memory_space<vmem>>
    tpu.enqueue_dma source(%45 : memref<1x128xf32, #tpu.memory_space<any>>) target(%46 : memref<1x128xf32, #tpu.memory_space<vmem>>) target_semaphore(%arg12 : memref<!tpu.dma_semaphore, #tpu.memory_space<semaphore_mem>>)
    %c0_i32_33 = arith.constant 0 : i32
    %47 = arith.addi %0, %c0_i32_33 : i32
    %c7_i32 = arith.constant 7 : i32
    %48 = arith.addi %47, %c7_i32 : i32
    %49 = arith.index_cast %48 : i32 to index
    %50 = memref.load %arg1[%49] : memref<32xi32, #tpu.memory_space<smem>>
    %c0_i32_34 = arith.constant 0 : i32
    %51 = tpu.memref_slice %arg2[%50, %c0_i32_34] : memref<50x128xf32, #tpu.memory_space<any>> -> memref<1x128xf32, #tpu.memory_space<any>>
    %c7_i32_35 = arith.constant 7 : i32
    %c0_i32_36 = arith.constant 0 : i32
    %52 = tpu.memref_slice %arg10[%c7_i32_35, %c0_i32_36] : memref<8x128xf32, #tpu.memory_space<vmem>> -> memref<1x128xf32, #tpu.memory_space<vmem>>
    tpu.enqueue_dma source(%51 : memref<1x128xf32, #tpu.memory_space<any>>) target(%52 : memref<1x128xf32, #tpu.memory_space<vmem>>) target_semaphore(%arg12 : memref<!tpu.dma_semaphore, #tpu.memory_space<semaphore_mem>>)
    %c8_i32 = arith.constant 8 : i32
    %53 = arith.addi %0, %c8_i32 : i32
    %c0_i32_37 = arith.constant 0 : i32
    %54 = arith.addi %53, %c0_i32_37 : i32
    %55 = arith.index_cast %54 : i32 to index
    %56 = memref.load %arg1[%55] : memref<32xi32, #tpu.memory_space<smem>>
    %c0_i32_38 = arith.constant 0 : i32
    %57 = tpu.memref_slice %arg2[%56, %c0_i32_38] : memref<50x128xf32, #tpu.memory_space<any>> -> memref<1x128xf32, #tpu.memory_space<any>>
    %c0_i32_39 = arith.constant 0 : i32
    %c0_i32_40 = arith.constant 0 : i32
    %58 = tpu.memref_slice %arg11[%c0_i32_39, %c0_i32_40] : memref<8x128xf32, #tpu.memory_space<vmem>> -> memref<1x128xf32, #tpu.memory_space<vmem>>
    tpu.enqueue_dma source(%57 : memref<1x128xf32, #tpu.memory_space<any>>) target(%58 : memref<1x128xf32, #tpu.memory_space<vmem>>) target_semaphore(%arg13 : memref<!tpu.dma_semaphore, #tpu.memory_space<semaphore_mem>>)
    %c8_i32_41 = arith.constant 8 : i32
    %59 = arith.addi %0, %c8_i32_41 : i32
    %c1_i32_42 = arith.constant 1 : i32
    %60 = arith.addi %59, %c1_i32_42 : i32
    %61 = arith.index_cast %60 : i32 to index
    %62 = memref.load %arg1[%61] : memref<32xi32, #tpu.memory_space<smem>>
    %c0_i32_43 = arith.constant 0 : i32
    %63 = tpu.memref_slice %arg2[%62, %c0_i32_43] : memref<50x128xf32, #tpu.memory_space<any>> -> memref<1x128xf32, #tpu.memory_space<any>>
    %c1_i32_44 = arith.constant 1 : i32
    %c0_i32_45 = arith.constant 0 : i32
    %64 = tpu.memref_slice %arg11[%c1_i32_44, %c0_i32_45] : memref<8x128xf32, #tpu.memory_space<vmem>> -> memref<1x128xf32, #tpu.memory_space<vmem>>
    tpu.enqueue_dma source(%63 : memref<1x128xf32, #tpu.memory_space<any>>) target(%64 : memref<1x128xf32, #tpu.memory_space<vmem>>) target_semaphore(%arg13 : memref<!tpu.dma_semaphore, #tpu.memory_space<semaphore_mem>>)
    %c8_i32_46 = arith.constant 8 : i32
    %65 = arith.addi %0, %c8_i32_46 : i32
    %c2_i32_47 = arith.constant 2 : i32
    %66 = arith.addi %65, %c2_i32_47 : i32
    %67 = arith.index_cast %66 : i32 to index
    %68 = memref.load %arg1[%67] : memref<32xi32, #tpu.memory_space<smem>>
    %c0_i32_48 = arith.constant 0 : i32
    %69 = tpu.memref_slice %arg2[%68, %c0_i32_48] : memref<50x128xf32, #tpu.memory_space<any>> -> memref<1x128xf32, #tpu.memory_space<any>>
    %c2_i32_49 = arith.constant 2 : i32
    %c0_i32_50 = arith.constant 0 : i32
    %70 = tpu.memref_slice %arg11[%c2_i32_49, %c0_i32_50] : memref<8x128xf32, #tpu.memory_space<vmem>> -> memref<1x128xf32, #tpu.memory_space<vmem>>
    tpu.enqueue_dma source(%69 : memref<1x128xf32, #tpu.memory_space<any>>) target(%70 : memref<1x128xf32, #tpu.memory_space<vmem>>) target_semaphore(%arg13 : memref<!tpu.dma_semaphore, #tpu.memory_space<semaphore_mem>>)
    %c8_i32_51 = arith.constant 8 : i32
    %71 = arith.addi %0, %c8_i32_51 : i32
    %c3_i32_52 = arith.constant 3 : i32
    %72 = arith.addi %71, %c3_i32_52 : i32
    %73 = arith.index_cast %72 : i32 to index
    %74 = memref.load %arg1[%73] : memref<32xi32, #tpu.memory_space<smem>>
    %c0_i32_53 = arith.constant 0 : i32
    %75 = tpu.memref_slice %arg2[%74, %c0_i32_53] : memref<50x128xf32, #tpu.memory_space<any>> -> memref<1x128xf32, #tpu.memory_space<any>>
    %c3_i32_54 = arith.constant 3 : i32
    %c0_i32_55 = arith.constant 0 : i32
    %76 = tpu.memref_slice %arg11[%c3_i32_54, %c0_i32_55] : memref<8x128xf32, #tpu.memory_space<vmem>> -> memref<1x128xf32, #tpu.memory_space<vmem>>
    tpu.enqueue_dma source(%75 : memref<1x128xf32, #tpu.memory_space<any>>) target(%76 : memref<1x128xf32, #tpu.memory_space<vmem>>) target_semaphore(%arg13 : memref<!tpu.dma_semaphore, #tpu.memory_space<semaphore_mem>>)
    %c8_i32_56 = arith.constant 8 : i32
    %77 = arith.addi %0, %c8_i32_56 : i32
    %c4_i32_57 = arith.constant 4 : i32
    %78 = arith.addi %77, %c4_i32_57 : i32
    %79 = arith.index_cast %78 : i32 to index
    %80 = memref.load %arg1[%79] : memref<32xi32, #tpu.memory_space<smem>>
    %c0_i32_58 = arith.constant 0 : i32
    %81 = tpu.memref_slice %arg2[%80, %c0_i32_58] : memref<50x128xf32, #tpu.memory_space<any>> -> memref<1x128xf32, #tpu.memory_space<any>>
    %c4_i32_59 = arith.constant 4 : i32
    %c0_i32_60 = arith.constant 0 : i32
    %82 = tpu.memref_slice %arg11[%c4_i32_59, %c0_i32_60] : memref<8x128xf32, #tpu.memory_space<vmem>> -> memref<1x128xf32, #tpu.memory_space<vmem>>
    tpu.enqueue_dma source(%81 : memref<1x128xf32, #tpu.memory_space<any>>) target(%82 : memref<1x128xf32, #tpu.memory_space<vmem>>) target_semaphore(%arg13 : memref<!tpu.dma_semaphore, #tpu.memory_space<semaphore_mem>>)
    %c8_i32_61 = arith.constant 8 : i32
    %83 = arith.addi %0, %c8_i32_61 : i32
    %c5_i32_62 = arith.constant 5 : i32
    %84 = arith.addi %83, %c5_i32_62 : i32
    %85 = arith.index_cast %84 : i32 to index
    %86 = memref.load %arg1[%85] : memref<32xi32, #tpu.memory_space<smem>>
    %c0_i32_63 = arith.constant 0 : i32
    %87 = tpu.memref_slice %arg2[%86, %c0_i32_63] : memref<50x128xf32, #tpu.memory_space<any>> -> memref<1x128xf32, #tpu.memory_space<any>>
    %c5_i32_64 = arith.constant 5 : i32
    %c0_i32_65 = arith.constant 0 : i32
    %88 = tpu.memref_slice %arg11[%c5_i32_64, %c0_i32_65] : memref<8x128xf32, #tpu.memory_space<vmem>> -> memref<1x128xf32, #tpu.memory_space<vmem>>
    tpu.enqueue_dma source(%87 : memref<1x128xf32, #tpu.memory_space<any>>) target(%88 : memref<1x128xf32, #tpu.memory_space<vmem>>) target_semaphore(%arg13 : memref<!tpu.dma_semaphore, #tpu.memory_space<semaphore_mem>>)
    %c8_i32_66 = arith.constant 8 : i32
    %89 = arith.addi %0, %c8_i32_66 : i32
    %c6_i32_67 = arith.constant 6 : i32
    %90 = arith.addi %89, %c6_i32_67 : i32
    %91 = arith.index_cast %90 : i32 to index
    %92 = memref.load %arg1[%91] : memref<32xi32, #tpu.memory_space<smem>>
    %c0_i32_68 = arith.constant 0 : i32
    %93 = tpu.memref_slice %arg2[%92, %c0_i32_68] : memref<50x128xf32, #tpu.memory_space<any>> -> memref<1x128xf32, #tpu.memory_space<any>>
    %c6_i32_69 = arith.constant 6 : i32
    %c0_i32_70 = arith.constant 0 : i32
    %94 = tpu.memref_slice %arg11[%c6_i32_69, %c0_i32_70] : memref<8x128xf32, #tpu.memory_space<vmem>> -> memref<1x128xf32, #tpu.memory_space<vmem>>
    tpu.enqueue_dma source(%93 : memref<1x128xf32, #tpu.memory_space<any>>) target(%94 : memref<1x128xf32, #tpu.memory_space<vmem>>) target_semaphore(%arg13 : memref<!tpu.dma_semaphore, #tpu.memory_space<semaphore_mem>>)
    %c8_i32_71 = arith.constant 8 : i32
    %95 = arith.addi %0, %c8_i32_71 : i32
    %c7_i32_72 = arith.constant 7 : i32
    %96 = arith.addi %95, %c7_i32_72 : i32
    %97 = arith.index_cast %96 : i32 to index
    %98 = memref.load %arg1[%97] : memref<32xi32, #tpu.memory_space<smem>>
    %c0_i32_73 = arith.constant 0 : i32
    %99 = tpu.memref_slice %arg2[%98, %c0_i32_73] : memref<50x128xf32, #tpu.memory_space<any>> -> memref<1x128xf32, #tpu.memory_space<any>>
    %c7_i32_74 = arith.constant 7 : i32
    %c0_i32_75 = arith.constant 0 : i32
    %100 = tpu.memref_slice %arg11[%c7_i32_74, %c0_i32_75] : memref<8x128xf32, #tpu.memory_space<vmem>> -> memref<1x128xf32, #tpu.memory_space<vmem>>
    tpu.enqueue_dma source(%99 : memref<1x128xf32, #tpu.memory_space<any>>) target(%100 : memref<1x128xf32, #tpu.memory_space<vmem>>) target_semaphore(%arg13 : memref<!tpu.dma_semaphore, #tpu.memory_space<semaphore_mem>>)
    %c0_76 = arith.constant 0 : index
    %c0_77 = arith.constant 0 : index
    %101 = vector.load %arg7[%c0_76, %c0_77] : memref<16x1xi32, #tpu.memory_space<vmem>>, vector<8x1xi32>
    %102 = vector.broadcast %101 : vector<8x1xi32> to vector<8x24xi32>
    %103 = arith.cmpi eq, %4, %102 : vector<8x24xi32>
    %104 = arith.extui %103 : vector<8x24xi1> to vector<8x24xi32>
    %105 = arith.sitofp %104 : vector<8x24xi32> to vector<8x24xf32>
    %cst = arith.constant dense<0.000000e+00> : vector<8x128xf32>
    %106 = tpu.matmul %105, %3, %cst {dimension_numbers = #tpu.dot_dimension_numbers<[1], [0], [0], [1], [0, 0, 1, 1], [], []>} : vector<8x24xf32>, vector<24x128xf32>, vector<8x128xf32> -> vector<8x128xf32>
    %c0_78 = arith.constant 0 : index
    %c0_79 = arith.constant 0 : index
    %107 = vector.load %arg8[%c0_78, %c0_79] : memref<16x1xi32, #tpu.memory_space<vmem>>, vector<8x1xi32>
    %c0_i32_80 = arith.constant 0 : i32
    %108 = vector.broadcast %c0_i32_80 : i32 to vector<8x1xi32>
    %109 = arith.cmpi eq, %107, %108 : vector<8x1xi32>
    %c0_81 = arith.constant 0 : index
    %c0_82 = arith.constant 0 : index
    %110 = vector.load %arg4[%c0_81, %c0_82] : memref<2x128xf32, #tpu.memory_space<vmem>>, vector<1x128xf32>
    %111 = vector.broadcast %110 : vector<1x128xf32> to vector<8x128xf32>
    %112 = arith.addf %106, %111 : vector<8x128xf32>
    %113 = vector.shape_cast %109 : vector<8x1xi1> to vector<8x1xi1>
    %114 = vector.broadcast %113 : vector<8x1xi1> to vector<8x128xi1>
    %115 = arith.select %114, %112, %106 : vector<8x128xi1>, vector<8x128xf32>
    %c1_i32_83 = arith.constant 1 : i32
    %116 = vector.broadcast %c1_i32_83 : i32 to vector<8x1xi32>
    %117 = arith.cmpi eq, %107, %116 : vector<8x1xi32>
    %c1 = arith.constant 1 : index
    %c0_84 = arith.constant 0 : index
    %118 = vector.load %arg4[%c1, %c0_84] : memref<2x128xf32, #tpu.memory_space<vmem>>, vector<1x128xf32>
    %119 = vector.broadcast %118 : vector<1x128xf32> to vector<8x128xf32>
    %120 = arith.addf %115, %119 : vector<8x128xf32>
    %121 = vector.shape_cast %117 : vector<8x1xi1> to vector<8x1xi1>
    %122 = vector.broadcast %121 : vector<8x1xi1> to vector<8x128xi1>
    %123 = arith.select %122, %120, %115 : vector<8x128xi1>, vector<8x128xf32>
    %c0_i32_85 = arith.constant 0 : i32
    %c0_i32_86 = arith.constant 0 : i32
    %124 = tpu.memref_slice %arg2[%c0_i32_85, %c0_i32_86] : memref<50x128xf32, #tpu.memory_space<any>> -> memref<1x128xf32, #tpu.memory_space<any>>
    %c0_i32_87 = arith.constant 0 : i32
    %c0_i32_88 = arith.constant 0 : i32
    %125 = tpu.memref_slice %arg10[%c0_i32_87, %c0_i32_88] : memref<8x128xf32, #tpu.memory_space<vmem>> -> memref<1x128xf32, #tpu.memory_space<vmem>>
    tpu.wait_dma2 semaphore(%arg12 : memref<!tpu.dma_semaphore, #tpu.memory_space<semaphore_mem>>) src(%124 : memref<1x128xf32, #tpu.memory_space<any>>) dst(%125 : memref<1x128xf32, #tpu.memory_space<vmem>>)
    %c0_i32_89 = arith.constant 0 : i32
    %c0_i32_90 = arith.constant 0 : i32
    %126 = tpu.memref_slice %arg2[%c0_i32_89, %c0_i32_90] : memref<50x128xf32, #tpu.memory_space<any>> -> memref<1x128xf32, #tpu.memory_space<any>>
    %c0_i32_91 = arith.constant 0 : i32
    %c0_i32_92 = arith.constant 0 : i32
    %127 = tpu.memref_slice %arg10[%c0_i32_91, %c0_i32_92] : memref<8x128xf32, #tpu.memory_space<vmem>> -> memref<1x128xf32, #tpu.memory_space<vmem>>
    tpu.wait_dma2 semaphore(%arg12 : memref<!tpu.dma_semaphore, #tpu.memory_space<semaphore_mem>>) src(%126 : memref<1x128xf32, #tpu.memory_space<any>>) dst(%127 : memref<1x128xf32, #tpu.memory_space<vmem>>)
    %c0_i32_93 = arith.constant 0 : i32
    %c0_i32_94 = arith.constant 0 : i32
    %128 = tpu.memref_slice %arg2[%c0_i32_93, %c0_i32_94] : memref<50x128xf32, #tpu.memory_space<any>> -> memref<1x128xf32, #tpu.memory_space<any>>
    %c0_i32_95 = arith.constant 0 : i32
    %c0_i32_96 = arith.constant 0 : i32
    %129 = tpu.memref_slice %arg10[%c0_i32_95, %c0_i32_96] : memref<8x128xf32, #tpu.memory_space<vmem>> -> memref<1x128xf32, #tpu.memory_space<vmem>>
    tpu.wait_dma2 semaphore(%arg12 : memref<!tpu.dma_semaphore, #tpu.memory_space<semaphore_mem>>) src(%128 : memref<1x128xf32, #tpu.memory_space<any>>) dst(%129 : memref<1x128xf32, #tpu.memory_space<vmem>>)
    %c0_i32_97 = arith.constant 0 : i32
    %c0_i32_98 = arith.constant 0 : i32
    %130 = tpu.memref_slice %arg2[%c0_i32_97, %c0_i32_98] : memref<50x128xf32, #tpu.memory_space<any>> -> memref<1x128xf32, #tpu.memory_space<any>>
    %c0_i32_99 = arith.constant 0 : i32
    %c0_i32_100 = arith.constant 0 : i32
    %131 = tpu.memref_slice %arg10[%c0_i32_99, %c0_i32_100] : memref<8x128xf32, #tpu.memory_space<vmem>> -> memref<1x128xf32, #tpu.memory_space<vmem>>
    tpu.wait_dma2 semaphore(%arg12 : memref<!tpu.dma_semaphore, #tpu.memory_space<semaphore_mem>>) src(%130 : memref<1x128xf32, #tpu.memory_space<any>>) dst(%131 : memref<1x128xf32, #tpu.memory_space<vmem>>)
    %c0_i32_101 = arith.constant 0 : i32
    %c0_i32_102 = arith.constant 0 : i32
    %132 = tpu.memref_slice %arg2[%c0_i32_101, %c0_i32_102] : memref<50x128xf32, #tpu.memory_space<any>> -> memref<1x128xf32, #tpu.memory_space<any>>
    %c0_i32_103 = arith.constant 0 : i32
    %c0_i32_104 = arith.constant 0 : i32
    %133 = tpu.memref_slice %arg10[%c0_i32_103, %c0_i32_104] : memref<8x128xf32, #tpu.memory_space<vmem>> -> memref<1x128xf32, #tpu.memory_space<vmem>>
    tpu.wait_dma2 semaphore(%arg12 : memref<!tpu.dma_semaphore, #tpu.memory_space<semaphore_mem>>) src(%132 : memref<1x128xf32, #tpu.memory_space<any>>) dst(%133 : memref<1x128xf32, #tpu.memory_space<vmem>>)
    %c0_i32_105 = arith.constant 0 : i32
    %c0_i32_106 = arith.constant 0 : i32
    %134 = tpu.memref_slice %arg2[%c0_i32_105, %c0_i32_106] : memref<50x128xf32, #tpu.memory_space<any>> -> memref<1x128xf32, #tpu.memory_space<any>>
    %c0_i32_107 = arith.constant 0 : i32
    %c0_i32_108 = arith.constant 0 : i32
    %135 = tpu.memref_slice %arg10[%c0_i32_107, %c0_i32_108] : memref<8x128xf32, #tpu.memory_space<vmem>> -> memref<1x128xf32, #tpu.memory_space<vmem>>
    tpu.wait_dma2 semaphore(%arg12 : memref<!tpu.dma_semaphore, #tpu.memory_space<semaphore_mem>>) src(%134 : memref<1x128xf32, #tpu.memory_space<any>>) dst(%135 : memref<1x128xf32, #tpu.memory_space<vmem>>)
    %c0_i32_109 = arith.constant 0 : i32
    %c0_i32_110 = arith.constant 0 : i32
    %136 = tpu.memref_slice %arg2[%c0_i32_109, %c0_i32_110] : memref<50x128xf32, #tpu.memory_space<any>> -> memref<1x128xf32, #tpu.memory_space<any>>
    %c0_i32_111 = arith.constant 0 : i32
    %c0_i32_112 = arith.constant 0 : i32
    %137 = tpu.memref_slice %arg10[%c0_i32_111, %c0_i32_112] : memref<8x128xf32, #tpu.memory_space<vmem>> -> memref<1x128xf32, #tpu.memory_space<vmem>>
    tpu.wait_dma2 semaphore(%arg12 : memref<!tpu.dma_semaphore, #tpu.memory_space<semaphore_mem>>) src(%136 : memref<1x128xf32, #tpu.memory_space<any>>) dst(%137 : memref<1x128xf32, #tpu.memory_space<vmem>>)
    %c0_i32_113 = arith.constant 0 : i32
    %c0_i32_114 = arith.constant 0 : i32
    %138 = tpu.memref_slice %arg2[%c0_i32_113, %c0_i32_114] : memref<50x128xf32, #tpu.memory_space<any>> -> memref<1x128xf32, #tpu.memory_space<any>>
    %c0_i32_115 = arith.constant 0 : i32
    %c0_i32_116 = arith.constant 0 : i32
    %139 = tpu.memref_slice %arg10[%c0_i32_115, %c0_i32_116] : memref<8x128xf32, #tpu.memory_space<vmem>> -> memref<1x128xf32, #tpu.memory_space<vmem>>
    tpu.wait_dma2 semaphore(%arg12 : memref<!tpu.dma_semaphore, #tpu.memory_space<semaphore_mem>>) src(%138 : memref<1x128xf32, #tpu.memory_space<any>>) dst(%139 : memref<1x128xf32, #tpu.memory_space<vmem>>)
    %c0_117 = arith.constant 0 : index
    %c0_118 = arith.constant 0 : index
    %140 = vector.load %arg10[%c0_117, %c0_118] : memref<8x128xf32, #tpu.memory_space<vmem>>, vector<8x128xf32>
    %141 = arith.addf %140, %123 : vector<8x128xf32>
    %cst_119 = arith.constant dense<0.000000e+00> : vector<8xf32>
    %142 = vector.multi_reduction <add>, %141, %cst_119 [1] : vector<8x128xf32> to vector<8xf32>
    %143 = vector.shape_cast %142 : vector<8xf32> to vector<8x1xf32>
    %cst_120 = arith.constant 1.280000e+02 : f32
    %144 = vector.broadcast %cst_120 : f32 to vector<8x1xf32>
    %145 = arith.divf %143, %144 : vector<8x1xf32>
    %146 = vector.broadcast %145 : vector<8x1xf32> to vector<8x128xf32>
    %147 = arith.subf %141, %146 : vector<8x128xf32>
    %148 = arith.mulf %147, %147 : vector<8x128xf32>
    %cst_121 = arith.constant dense<0.000000e+00> : vector<8xf32>
    %149 = vector.multi_reduction <add>, %148, %cst_121 [1] : vector<8x128xf32> to vector<8xf32>
    %150 = vector.shape_cast %149 : vector<8xf32> to vector<8x1xf32>
    %cst_122 = arith.constant 1.280000e+02 : f32
    %151 = vector.broadcast %cst_122 : f32 to vector<8x1xf32>
    %152 = arith.divf %150, %151 : vector<8x1xf32>
    %cst_123 = arith.constant 9.99999996E-13 : f32
    %153 = vector.broadcast %cst_123 : f32 to vector<8x1xf32>
    %154 = arith.addf %152, %153 : vector<8x1xf32>
    %155 = math.rsqrt %154 : vector<8x1xf32>
    %156 = vector.broadcast %155 : vector<8x1xf32> to vector<8x128xf32>
    %157 = arith.mulf %147, %156 : vector<8x128xf32>
    %158 = vector.broadcast %1 : vector<1x128xf32> to vector<8x128xf32>
    %159 = arith.mulf %157, %158 : vector<8x128xf32>
    %160 = vector.broadcast %2 : vector<1x128xf32> to vector<8x128xf32>
    %161 = arith.addf %159, %160 : vector<8x128xf32>
    %c0_124 = arith.constant 0 : index
    %c0_125 = arith.constant 0 : index
    %162 = vector.load %arg9[%c0_124, %c0_125] : memref<16x128xf32, #tpu.memory_space<vmem>>, vector<8x128xf32>
    tpu.vector_store %arg9[%c0_124, %c0_125], %161 {strides = array<i32>} : memref<16x128xf32, #tpu.memory_space<vmem>>, vector<8x128xf32>,
    %c8 = arith.constant 8 : index
    %c0_126 = arith.constant 0 : index
    %163 = vector.load %arg7[%c8, %c0_126] : memref<16x1xi32, #tpu.memory_space<vmem>>, vector<8x1xi32>
    %164 = vector.broadcast %163 : vector<8x1xi32> to vector<8x24xi32>
    %165 = arith.cmpi eq, %4, %164 : vector<8x24xi32>
    %166 = arith.extui %165 : vector<8x24xi1> to vector<8x24xi32>
    %167 = arith.sitofp %166 : vector<8x24xi32> to vector<8x24xf32>
    %cst_127 = arith.constant dense<0.000000e+00> : vector<8x128xf32>
    %168 = tpu.matmul %167, %3, %cst_127 {dimension_numbers = #tpu.dot_dimension_numbers<[1], [0], [0], [1], [0, 0, 1, 1], [], []>} : vector<8x24xf32>, vector<24x128xf32>, vector<8x128xf32> -> vector<8x128xf32>
    %c8_128 = arith.constant 8 : index
    %c0_129 = arith.constant 0 : index
    %169 = vector.load %arg8[%c8_128, %c0_129] : memref<16x1xi32, #tpu.memory_space<vmem>>, vector<8x1xi32>
    %c0_i32_130 = arith.constant 0 : i32
    %170 = vector.broadcast %c0_i32_130 : i32 to vector<8x1xi32>
    %171 = arith.cmpi eq, %169, %170 : vector<8x1xi32>
    %c0_131 = arith.constant 0 : index
    %c0_132 = arith.constant 0 : index
    %172 = vector.load %arg4[%c0_131, %c0_132] : memref<2x128xf32, #tpu.memory_space<vmem>>, vector<1x128xf32>
    %173 = vector.broadcast %172 : vector<1x128xf32> to vector<8x128xf32>
    %174 = arith.addf %168, %173 : vector<8x128xf32>
    %175 = vector.shape_cast %171 : vector<8x1xi1> to vector<8x1xi1>
    %176 = vector.broadcast %175 : vector<8x1xi1> to vector<8x128xi1>
    %177 = arith.select %176, %174, %168 : vector<8x128xi1>, vector<8x128xf32>
    %c1_i32_133 = arith.constant 1 : i32
    %178 = vector.broadcast %c1_i32_133 : i32 to vector<8x1xi32>
    %179 = arith.cmpi eq, %169, %178 : vector<8x1xi32>
    %c1_134 = arith.constant 1 : index
    %c0_135 = arith.constant 0 : index
    %180 = vector.load %arg4[%c1_134, %c0_135] : memref<2x128xf32, #tpu.memory_space<vmem>>, vector<1x128xf32>
    %181 = vector.broadcast %180 : vector<1x128xf32> to vector<8x128xf32>
    %182 = arith.addf %177, %181 : vector<8x128xf32>
    %183 = vector.shape_cast %179 : vector<8x1xi1> to vector<8x1xi1>
    %184 = vector.broadcast %183 : vector<8x1xi1> to vector<8x128xi1>
    %185 = arith.select %184, %182, %177 : vector<8x128xi1>, vector<8x128xf32>
    %c0_i32_136 = arith.constant 0 : i32
    %c0_i32_137 = arith.constant 0 : i32
    %186 = tpu.memref_slice %arg2[%c0_i32_136, %c0_i32_137] : memref<50x128xf32, #tpu.memory_space<any>> -> memref<1x128xf32, #tpu.memory_space<any>>
    %c0_i32_138 = arith.constant 0 : i32
    %c0_i32_139 = arith.constant 0 : i32
    %187 = tpu.memref_slice %arg11[%c0_i32_138, %c0_i32_139] : memref<8x128xf32, #tpu.memory_space<vmem>> -> memref<1x128xf32, #tpu.memory_space<vmem>>
    tpu.wait_dma2 semaphore(%arg13 : memref<!tpu.dma_semaphore, #tpu.memory_space<semaphore_mem>>) src(%186 : memref<1x128xf32, #tpu.memory_space<any>>) dst(%187 : memref<1x128xf32, #tpu.memory_space<vmem>>)
    %c0_i32_140 = arith.constant 0 : i32
    %c0_i32_141 = arith.constant 0 : i32
    %188 = tpu.memref_slice %arg2[%c0_i32_140, %c0_i32_141] : memref<50x128xf32, #tpu.memory_space<any>> -> memref<1x128xf32, #tpu.memory_space<any>>
    %c0_i32_142 = arith.constant 0 : i32
    %c0_i32_143 = arith.constant 0 : i32
    %189 = tpu.memref_slice %arg11[%c0_i32_142, %c0_i32_143] : memref<8x128xf32, #tpu.memory_space<vmem>> -> memref<1x128xf32, #tpu.memory_space<vmem>>
    tpu.wait_dma2 semaphore(%arg13 : memref<!tpu.dma_semaphore, #tpu.memory_space<semaphore_mem>>) src(%188 : memref<1x128xf32, #tpu.memory_space<any>>) dst(%189 : memref<1x128xf32, #tpu.memory_space<vmem>>)
    %c0_i32_144 = arith.constant 0 : i32
    %c0_i32_145 = arith.constant 0 : i32
    %190 = tpu.memref_slice %arg2[%c0_i32_144, %c0_i32_145] : memref<50x128xf32, #tpu.memory_space<any>> -> memref<1x128xf32, #tpu.memory_space<any>>
    %c0_i32_146 = arith.constant 0 : i32
    %c0_i32_147 = arith.constant 0 : i32
    %191 = tpu.memref_slice %arg11[%c0_i32_146, %c0_i32_147] : memref<8x128xf32, #tpu.memory_space<vmem>> -> memref<1x128xf32, #tpu.memory_space<vmem>>
    tpu.wait_dma2 semaphore(%arg13 : memref<!tpu.dma_semaphore, #tpu.memory_space<semaphore_mem>>) src(%190 : memref<1x128xf32, #tpu.memory_space<any>>) dst(%191 : memref<1x128xf32, #tpu.memory_space<vmem>>)
    %c0_i32_148 = arith.constant 0 : i32
    %c0_i32_149 = arith.constant 0 : i32
    %192 = tpu.memref_slice %arg2[%c0_i32_148, %c0_i32_149] : memref<50x128xf32, #tpu.memory_space<any>> -> memref<1x128xf32, #tpu.memory_space<any>>
    %c0_i32_150 = arith.constant 0 : i32
    %c0_i32_151 = arith.constant 0 : i32
    %193 = tpu.memref_slice %arg11[%c0_i32_150, %c0_i32_151] : memref<8x128xf32, #tpu.memory_space<vmem>> -> memref<1x128xf32, #tpu.memory_space<vmem>>
    tpu.wait_dma2 semaphore(%arg13 : memref<!tpu.dma_semaphore, #tpu.memory_space<semaphore_mem>>) src(%192 : memref<1x128xf32, #tpu.memory_space<any>>) dst(%193 : memref<1x128xf32, #tpu.memory_space<vmem>>)
    %c0_i32_152 = arith.constant 0 : i32
    %c0_i32_153 = arith.constant 0 : i32
    %194 = tpu.memref_slice %arg2[%c0_i32_152, %c0_i32_153] : memref<50x128xf32, #tpu.memory_space<any>> -> memref<1x128xf32, #tpu.memory_space<any>>
    %c0_i32_154 = arith.constant 0 : i32
    %c0_i32_155 = arith.constant 0 : i32
    %195 = tpu.memref_slice %arg11[%c0_i32_154, %c0_i32_155] : memref<8x128xf32, #tpu.memory_space<vmem>> -> memref<1x128xf32, #tpu.memory_space<vmem>>
    tpu.wait_dma2 semaphore(%arg13 : memref<!tpu.dma_semaphore, #tpu.memory_space<semaphore_mem>>) src(%194 : memref<1x128xf32, #tpu.memory_space<any>>) dst(%195 : memref<1x128xf32, #tpu.memory_space<vmem>>)
    %c0_i32_156 = arith.constant 0 : i32
    %c0_i32_157 = arith.constant 0 : i32
    %196 = tpu.memref_slice %arg2[%c0_i32_156, %c0_i32_157] : memref<50x128xf32, #tpu.memory_space<any>> -> memref<1x128xf32, #tpu.memory_space<any>>
    %c0_i32_158 = arith.constant 0 : i32
    %c0_i32_159 = arith.constant 0 : i32
    %197 = tpu.memref_slice %arg11[%c0_i32_158, %c0_i32_159] : memref<8x128xf32, #tpu.memory_space<vmem>> -> memref<1x128xf32, #tpu.memory_space<vmem>>
    tpu.wait_dma2 semaphore(%arg13 : memref<!tpu.dma_semaphore, #tpu.memory_space<semaphore_mem>>) src(%196 : memref<1x128xf32, #tpu.memory_space<any>>) dst(%197 : memref<1x128xf32, #tpu.memory_space<vmem>>)
    %c0_i32_160 = arith.constant 0 : i32
    %c0_i32_161 = arith.constant 0 : i32
    %198 = tpu.memref_slice %arg2[%c0_i32_160, %c0_i32_161] : memref<50x128xf32, #tpu.memory_space<any>> -> memref<1x128xf32, #tpu.memory_space<any>>
    %c0_i32_162 = arith.constant 0 : i32
    %c0_i32_163 = arith.constant 0 : i32
    %199 = tpu.memref_slice %arg11[%c0_i32_162, %c0_i32_163] : memref<8x128xf32, #tpu.memory_space<vmem>> -> memref<1x128xf32, #tpu.memory_space<vmem>>
    tpu.wait_dma2 semaphore(%arg13 : memref<!tpu.dma_semaphore, #tpu.memory_space<semaphore_mem>>) src(%198 : memref<1x128xf32, #tpu.memory_space<any>>) dst(%199 : memref<1x128xf32, #tpu.memory_space<vmem>>)
    %c0_i32_164 = arith.constant 0 : i32
    %c0_i32_165 = arith.constant 0 : i32
    %200 = tpu.memref_slice %arg2[%c0_i32_164, %c0_i32_165] : memref<50x128xf32, #tpu.memory_space<any>> -> memref<1x128xf32, #tpu.memory_space<any>>
    %c0_i32_166 = arith.constant 0 : i32
    %c0_i32_167 = arith.constant 0 : i32
    %201 = tpu.memref_slice %arg11[%c0_i32_166, %c0_i32_167] : memref<8x128xf32, #tpu.memory_space<vmem>> -> memref<1x128xf32, #tpu.memory_space<vmem>>
    tpu.wait_dma2 semaphore(%arg13 : memref<!tpu.dma_semaphore, #tpu.memory_space<semaphore_mem>>) src(%200 : memref<1x128xf32, #tpu.memory_space<any>>) dst(%201 : memref<1x128xf32, #tpu.memory_space<vmem>>)
    %c0_168 = arith.constant 0 : index
    %c0_169 = arith.constant 0 : index
    %202 = vector.load %arg11[%c0_168, %c0_169] : memref<8x128xf32, #tpu.memory_space<vmem>>, vector<8x128xf32>
    %203 = arith.addf %202, %185 : vector<8x128xf32>
    %cst_170 = arith.constant dense<0.000000e+00> : vector<8xf32>
    %204 = vector.multi_reduction <add>, %203, %cst_170 [1] : vector<8x128xf32> to vector<8xf32>
    %205 = vector.shape_cast %204 : vector<8xf32> to vector<8x1xf32>
    %cst_171 = arith.constant 1.280000e+02 : f32
    %206 = vector.broadcast %cst_171 : f32 to vector<8x1xf32>
    %207 = arith.divf %205, %206 : vector<8x1xf32>
    %208 = vector.broadcast %207 : vector<8x1xf32> to vector<8x128xf32>
    %209 = arith.subf %203, %208 : vector<8x128xf32>
    %210 = arith.mulf %209, %209 : vector<8x128xf32>
    %cst_172 = arith.constant dense<0.000000e+00> : vector<8xf32>
    %211 = vector.multi_reduction <add>, %210, %cst_172 [1] : vector<8x128xf32> to vector<8xf32>
    %212 = vector.shape_cast %211 : vector<8xf32> to vector<8x1xf32>
    %cst_173 = arith.constant 1.280000e+02 : f32
    %213 = vector.broadcast %cst_173 : f32 to vector<8x1xf32>
    %214 = arith.divf %212, %213 : vector<8x1xf32>
    %cst_174 = arith.constant 9.99999996E-13 : f32
    %215 = vector.broadcast %cst_174 : f32 to vector<8x1xf32>
    %216 = arith.addf %214, %215 : vector<8x1xf32>
    %217 = math.rsqrt %216 : vector<8x1xf32>
    %218 = vector.broadcast %217 : vector<8x1xf32> to vector<8x128xf32>
    %219 = arith.mulf %209, %218 : vector<8x128xf32>
    %220 = vector.broadcast %1 : vector<1x128xf32> to vector<8x128xf32>
    %221 = arith.mulf %219, %220 : vector<8x128xf32>
    %222 = vector.broadcast %2 : vector<1x128xf32> to vector<8x128xf32>
    %223 = arith.addf %221, %222 : vector<8x128xf32>
    %c8_175 = arith.constant 8 : index
    %c0_176 = arith.constant 0 : index
    %224 = vector.load %arg9[%c8_175, %c0_176] : memref<16x128xf32, #tpu.memory_space<vmem>>, vector<8x128xf32>
    tpu.vector_store %arg9[%c8_175, %c0_176], %223 {strides = array<i32>} : memref<16x128xf32, #tpu.memory_space<vmem>>, vector<8x128xf32>,
    return
  }
  func.func @transform_1(%arg0: i32, %arg1: memref<32xi32, #tpu.memory_space<smem>>) -> (i32, i32) {
    %c0_i32 = arith.constant 0 : i32
    %c0_i32_0 = arith.constant 0 : i32
    %c0_i32_1 = arith.constant 0 : i32
    return %c0_i32, %c0_i32_0 : i32, i32
  }
  func.func @transform_2(%arg0: i32, %arg1: memref<32xi32, #tpu.memory_space<smem>>) -> (i32, i32) {
    %c0_i32 = arith.constant 0 : i32
    %c0_i32_0 = arith.constant 0 : i32
    %c0_i32_1 = arith.constant 0 : i32
    return %c0_i32, %c0_i32_0 : i32, i32
  }
  func.func @transform_3(%arg0: i32, %arg1: memref<32xi32, #tpu.memory_space<smem>>) -> (i32, i32) {
    %c0_i32 = arith.constant 0 : i32
    %c0_i32_0 = arith.constant 0 : i32
    %c0_i32_1 = arith.constant 0 : i32
    return %c0_i32, %c0_i32_0 : i32, i32
  }
  func.func @transform_4(%arg0: i32, %arg1: memref<32xi32, #tpu.memory_space<smem>>) -> (i32, i32) {
    %c0_i32 = arith.constant 0 : i32
    %c0_i32_0 = arith.constant 0 : i32
    %c0_i32_1 = arith.constant 0 : i32
    return %c0_i32, %c0_i32_0 : i32, i32
  }
  func.func @transform_5(%arg0: i32, %arg1: memref<32xi32, #tpu.memory_space<smem>>) -> (i32, i32) {
    %c0_i32 = arith.constant 0 : i32
    %c0_i32_0 = arith.constant 0 : i32
    return %arg0, %c0_i32 : i32, i32
  }
  func.func @transform_6(%arg0: i32, %arg1: memref<32xi32, #tpu.memory_space<smem>>) -> (i32, i32) {
    %c0_i32 = arith.constant 0 : i32
    %c0_i32_0 = arith.constant 0 : i32
    return %arg0, %c0_i32 : i32, i32
  }
  func.func @transform_7(%arg0: i32, %arg1: memref<32xi32, #tpu.memory_space<smem>>) -> (i32, i32) {
    %c0_i32 = arith.constant 0 : i32
    %c0_i32_0 = arith.constant 0 : i32
    return %arg0, %c0_i32 : i32, i32
  }
}

</mosaic_0001>

<llo_original>
// kernel: tpu_custom_call.1
$region0: #{tpu_custom_call.1}
  #allocation0 [shape = 'u32[]', space=smem, size = 0x4, offset = 0x4, fixed_abs, tag = 'smem constant byte address 0x4 - core index']
  #allocation1 [shape = 'u32[144,128]{1,0:T(1,128)}', space=vmem, size = 0x12000, scoped, tag = 'internal scratch']
  #allocation2 [shape = 'f32[8,128]{1,0:T(8,128)}', space=vmem, size = 0x1000, scoped, tag = 'scratch operand']
  #allocation3 [shape = 'f32[8,128]{1,0:T(8,128)}', space=vmem, size = 0x1000, scoped, tag = 'scratch operand']
  #allocation4 [shape = 's32[1]{0}', space=sflag, size = 0x4, scoped, tag = 'scratch operand']
  #allocation5 [shape = 's32[1]{0}', space=sflag, size = 0x4, scoped, tag = 'scratch operand']
  #allocation6 [shape = 's32[1]{0}', space=sflag, size = 0x4, scoped, tag = 'scoped memory for tpu_custom_call.1']
  #allocation7 [shape = 'u8[512]{0}', space=smem, size = 0x200, scoped, tag = 'prefetched SMEM operand 0']
  #allocation12 [shape = 's32[]', space=sflag, size = 0x4, offset = 0, fixed_abs, tag = 'sflag constant byte address 0x0 - dummy sync flag']
  #allocation13 [shape = 's32[]', space=sflag, size = 0x4, offset = 0, fixed_abs, tag = 'sflag constant byte address 0x0 - dummy sync flag']
  #allocation14 [shape = 's32[]', space=sflag, size = 0x4, offset = 0, fixed_abs, tag = 'sflag constant byte address 0x0 - dummy sync flag']
  #allocation15 [shape = 's32[]', space=sflag, size = 0x4, offset = 0, fixed_abs, tag = 'sflag constant byte address 0x0 - dummy sync flag']
  #allocation16 [shape = 's32[]', space=sflag, size = 0x4, offset = 0, fixed_abs, tag = 'sflag constant byte address 0x0 - dummy sync flag']
  #allocation17 [shape = 's32[]', space=sflag, size = 0x4, offset = 0, fixed_abs, tag = 'sflag constant byte address 0x0 - dummy sync flag']
  #allocation18 [shape = 's32[]', space=sflag, size = 0x4, offset = 0, fixed_abs, tag = 'sflag constant byte address 0x0 - dummy sync flag']
  #allocation19 [shape = 's32[]', space=sflag, size = 0x4, offset = 0, fixed_abs, tag = 'sflag constant byte address 0x0 - dummy sync flag']
  #allocation20 [shape = 's32[]', space=sflag, size = 0x4, offset = 0, fixed_abs, tag = 'sflag constant byte address 0x0 - dummy sync flag']
  #allocation21 [shape = 's32[]', space=sflag, size = 0x4, offset = 0, fixed_abs, tag = 'sflag constant byte address 0x0 - dummy sync flag']
  #allocation22 [shape = 's32[]', space=sflag, size = 0x4, offset = 0, fixed_abs, tag = 'sflag constant byte address 0x0 - dummy sync flag']
  #allocation23 [shape = 's32[]', space=sflag, size = 0x4, offset = 0, fixed_abs, tag = 'sflag constant byte address 0x0 - dummy sync flag']
  #allocation24 [shape = 's32[]', space=sflag, size = 0x4, offset = 0, fixed_abs, tag = 'sflag constant byte address 0x0 - dummy sync flag']
  #allocation25 [shape = 's32[]', space=sflag, size = 0x4, offset = 0, fixed_abs, tag = 'sflag constant byte address 0x0 - dummy sync flag']
  #allocation26 [shape = 's32[]', space=sflag, size = 0x4, offset = 0, fixed_abs, tag = 'sflag constant byte address 0x0 - dummy sync flag']
  #allocation27 [shape = 's32[]', space=sflag, size = 0x4, offset = 0, fixed_abs, tag = 'sflag constant byte address 0x0 - dummy sync flag']
  %s0 = inlined_call_operand.vmem [shape: s32[32], index: 0, kind: input, shape index: {}]
  %s1 = inlined_call_operand.vmem [shape: f32[50,128], index: 1, kind: input, shape index: {}]
  %s2 = inlined_call_operand.hbm [shape: f32[24,128], index: 2, kind: input, shape index: {}]
  %s3 = inlined_call_operand.vmem [shape: f32[2,128], index: 3, kind: input, shape index: {}]
  %s4 = inlined_call_operand.vmem [shape: f32[1,128], index: 4, kind: input, shape index: {}]
  %s5 = inlined_call_operand.vmem [shape: f32[1,128], index: 5, kind: input, shape index: {}]
  %s6 = inlined_call_operand.vmem [shape: s32[32,1], index: 6, kind: input, shape index: {}]
  %s7 = inlined_call_operand.vmem [shape: s32[32,1], index: 7, kind: input, shape index: {}]
  %s8 = inlined_call_operand.hbm [shape: f32[32,128], index: 8, kind: output, shape index: {}]
  %s9 = sld [smem:[#allocation0]]
  $region541: #{tpu_custom_call.1} parent=0
    _
  %s11 = ssub.s32 1, %s9
  %s12 = scalar_select 0, %s11, %s9
  %s13 = sshll.u32 %s0, 4
  %s14 = int_to_ptr.vmem [resolvable:$true] %s13
  %16 = dma.vmem_to_smem %s14, 16, [#allocation7], [#allocation6]
  %17 = dma.done [#allocation6], 16
  %18 = sfence
  $region1: #{tpu_custom_call.1} parent=0
    #allocation8 [shape = 'u8[12288]{0}', space=vmem, size = 0x3000, scoped, tag = 'input window, operand 2, single buffered']
    #allocation9 [shape = 's32[2]{0}', space=sflag, size = 0x8, scoped, tag = 'scoped memory for tpu_custom_call.1']
    #allocation10 [shape = 's32[2]{0}', space=sflag, size = 0x8, scoped, tag = 'scoped memory for tpu_custom_call.1']
    #allocation11 [shape = 'u8[16384]{0}', space=vmem, size = 0x4000, scoped, tag = 'output window, operand 0']
    %19 = vsyncpa [#allocation9], 0
    %20 = vsyncpa [#allocation10], 0
    %s21 = scalar_lea.sflag [#allocation10], 1
    %22 = vsyncpa %s21, 0
    loop: start=0, step=1, limit=4
    $region2: #{tpu_custom_call.1} parent=1 // loop_pre_header
      _
    $region3: #{tpu_custom_call.1} parent=1 // loop_header
      %s24 = sphi 0, %s28
      %p25 = scmp.ge.s32.totalorder %s24, 4
      %s32 = sphi 0, %s32
      %s34 = sphi 0, %s32
      %s35 = sphi 0, %s34
      %s49 = sphi 0, %s35
      %s53 = sphi 0, %s53
      %s55 = sphi 0, %s53
      %s56 = sphi 0, %s55
      %s70 = sphi 0, %s56
      %s74 = sphi 0, %s74
      %s76 = sphi 0, %s74
      %s77 = sphi 0, %s76
      %s91 = sphi 0, %s77
      %s95 = sphi 0, %s95
      %s97 = sphi 0, %s95
      %s98 = sphi 0, %s97
      %s112 = sphi 0, %s98
      %s118 = sphi 0, %s120
      %s121 = sphi 0, %s118
      %s122 = sphi 0, %s121
      %s138 = sphi 0, %s122
      %s144 = sphi 0, %s146
      %s147 = sphi 0, %s144
      %s148 = sphi 0, %s147
      %s164 = sphi 0, %s148
      %s170 = sphi 0, %s172
      %s173 = sphi 0, %s170
      %s174 = sphi 0, %s173
      %s190 = sphi 0, %s174
    $region4: #{tpu_custom_call.1} parent=1 // loop_header_branch
      %27 = sbr.rel (%p25) target = $region8
    $region5: #{tpu_custom_call.1} parent=1 // loop_body
      %s29 = ssub.s32 %s24, 1
      %s30 = ssub.s32 %s24, 2
      %s31 = sadd.s32 %s24, 1
      %s33 = sadd.s32 %s32, 1
      %p36 = scmp.eq.s32.totalorder %s24, 1
      %p37 = scmp.ne.s32.totalorder %s32, %s34
      %p38 = scmp.eq.s32.totalorder %s24, 0
      %p39 = por %p37, %p38
      %p40 = scmp.ne.s32.totalorder %s32, %s34
      %p41 = scmp.eq.s32.totalorder %s29, 1
      %p42 = por %p40, %p41
      %p43 = scmp.ne.s32.totalorder %s34, %s35
      %p44 = scmp.eq.s32.totalorder %s29, 0
      %p45 = por %p43, %p44
      %p46 = scmp.ne.s32.totalorder %s34, %s35
      %p47 = scmp.eq.s32.totalorder %s30, 1
      %p48 = por %p46, %p47
      %p50 = scmp.ne.s32.totalorder %s35, %s49
      %p51 = scmp.eq.s32.totalorder %s30, 0
      %p52 = por %p50, %p51
      %s54 = sadd.s32 %s53, 1
      %p57 = scmp.eq.s32.totalorder %s24, 1
      %p58 = scmp.ne.s32.totalorder %s53, %s55
      %p59 = scmp.eq.s32.totalorder %s24, 0
      %p60 = por %p58, %p59
      %p61 = scmp.ne.s32.totalorder %s53, %s55
      %p62 = scmp.eq.s32.totalorder %s29, 1
      %p63 = por %p61, %p62
      %p64 = scmp.ne.s32.totalorder %s55, %s56
      %p65 = scmp.eq.s32.totalorder %s29, 0
      %p66 = por %p64, %p65
      %p67 = scmp.ne.s32.totalorder %s55, %s56
      %p68 = scmp.eq.s32.totalorder %s30, 1
      %p69 = por %p67, %p68
      %p71 = scmp.ne.s32.totalorder %s56, %s70
      %p72 = scmp.eq.s32.totalorder %s30, 0
      %p73 = por %p71, %p72
      %s75 = sadd.s32 %s74, 1
      %p78 = scmp.eq.s32.totalorder %s24, 1
      %p79 = scmp.ne.s32.totalorder %s74, %s76
      %p80 = scmp.eq.s32.totalorder %s24, 0
      %p81 = por %p79, %p80
      %p82 = scmp.ne.s32.totalorder %s74, %s76
      %p83 = scmp.eq.s32.totalorder %s29, 1
      %p84 = por %p82, %p83
      %p85 = scmp.ne.s32.totalorder %s76, %s77
      %p86 = scmp.eq.s32.totalorder %s29, 0
      %p87 = por %p85, %p86
      %p88 = scmp.ne.s32.totalorder %s76, %s77
      %p89 = scmp.eq.s32.totalorder %s30, 1
      %p90 = por %p88, %p89
      %p92 = scmp.ne.s32.totalorder %s77, %s91
      %p93 = scmp.eq.s32.totalorder %s30, 0
      %p94 = por %p92, %p93
      %s96 = sadd.s32 %s95, 1
      %p99 = scmp.eq.s32.totalorder %s24, 1
      %p100 = scmp.ne.s32.totalorder %s95, %s97
      %p101 = scmp.eq.s32.totalorder %s24, 0
      %p102 = por %p100, %p101
      %p103 = scmp.ne.s32.totalorder %s95, %s97
      %p104 = scmp.eq.s32.totalorder %s29, 1
      %p105 = por %p103, %p104
      %p106 = scmp.ne.s32.totalorder %s97, %s98
      %p107 = scmp.eq.s32.totalorder %s29, 0
      %p108 = por %p106, %p107
      %p109 = scmp.ne.s32.totalorder %s97, %s98
      %p110 = scmp.eq.s32.totalorder %s30, 1
      %p111 = por %p109, %p110
      %p113 = scmp.ne.s32.totalorder %s98, %s112
      %p114 = scmp.eq.s32.totalorder %s30, 0
      %p115 = por %p113, %p114
      %s116 = ssub.s32 %s24, %s31
      %p117 = scmp.eq.s32.totalorder %s116, 0
      %s119 = sadd.s32 %s118, 1
      %s120 = scalar_select %p117, %s118, %s119
      %p123 = pneg %p117
      %p124 = scmp.eq.s32.totalorder %s24, 1
      %p125 = por %p123, %p124
      %p126 = scmp.ne.s32.totalorder %s118, %s121
      %p127 = scmp.eq.s32.totalorder %s24, 0
      %p128 = por %p126, %p127
      %p129 = scmp.ne.s32.totalorder %s118, %s121
      %p130 = scmp.eq.s32.totalorder %s29, 1
      %p131 = por %p129, %p130
      %p132 = scmp.ne.s32.totalorder %s121, %s122
      %p133 = scmp.eq.s32.totalorder %s29, 0
      %p134 = por %p132, %p133
      %p135 = scmp.ne.s32.totalorder %s121, %s122
      %p136 = scmp.eq.s32.totalorder %s30, 1
      %p137 = por %p135, %p136
      %p139 = scmp.ne.s32.totalorder %s122, %s138
      %p140 = scmp.eq.s32.totalorder %s30, 0
      %p141 = por %p139, %p140
      %s142 = ssub.s32 %s24, %s31
      %p143 = scmp.eq.s32.totalorder %s142, 0
      %s145 = sadd.s32 %s144, 1
      %s146 = scalar_select %p143, %s144, %s145
      %p149 = pneg %p143
      %p150 = scmp.eq.s32.totalorder %s24, 1
      %p151 = por %p149, %p150
      %p152 = scmp.ne.s32.totalorder %s144, %s147
      %p153 = scmp.eq.s32.totalorder %s24, 0
      %p154 = por %p152, %p153
      %p155 = scmp.ne.s32.totalorder %s144, %s147
      %p156 = scmp.eq.s32.totalorder %s29, 1
      %p157 = por %p155, %p156
      %p158 = scmp.ne.s32.totalorder %s147, %s148
      %p159 = scmp.eq.s32.totalorder %s29, 0
      %p160 = por %p158, %p159
      %p161 = scmp.ne.s32.totalorder %s147, %s148
      %p162 = scmp.eq.s32.totalorder %s30, 1
      %p163 = por %p161, %p162
      %p165 = scmp.ne.s32.totalorder %s148, %s164
      %p166 = scmp.eq.s32.totalorder %s30, 0
      %p167 = por %p165, %p166
      %s168 = ssub.s32 %s24, %s31
      %p169 = scmp.eq.s32.totalorder %s168, 0
      %s171 = sadd.s32 %s170, 1
      %s172 = scalar_select %p169, %s170, %s171
      %p175 = pneg %p169
      %p176 = scmp.eq.s32.totalorder %s24, 1
      %p177 = por %p175, %p176
      %p178 = scmp.ne.s32.totalorder %s170, %s173
      %p179 = scmp.eq.s32.totalorder %s24, 0
      %p180 = por %p178, %p179
      %p181 = scmp.ne.s32.totalorder %s170, %s173
      %p182 = scmp.eq.s32.totalorder %s29, 1
      %p183 = por %p181, %p182
      %p184 = scmp.ne.s32.totalorder %s173, %s174
      %p185 = scmp.eq.s32.totalorder %s29, 0
      %p186 = por %p184, %p185
      %p187 = scmp.ne.s32.totalorder %s173, %s174
      %p188 = scmp.eq.s32.totalorder %s30, 1
      %p189 = por %p187, %p188
      %p191 = scmp.ne.s32.totalorder %s174, %s190
      %p192 = scmp.eq.s32.totalorder %s30, 0
      %p193 = por %p191, %p192
      %p194 = scmp.le.s32.totalorder 1, %s24
      %p195 = scmp.lt.s32.totalorder %s24, 3
      %p196 = pnand %p194, %p195
      %p197 = pneg %p196
      // Predicated region
      $region9: #{tpu_custom_call.1} parent=5 // pred_check
        _
      $region10: #{tpu_custom_call.1} parent=5 // pred_check_branch
        %199 = sbr.rel (%p196) target = $region12
      $region11: #{tpu_custom_call.1} parent=5 // pred_region
        %s200 = ssub.s32 %s24, 1
        // Predicated region
        $region13: #{tpu_custom_call.1} parent=11 // pred_check
          %p201 = pneg %p45
        $region14: #{tpu_custom_call.1} parent=11 // pred_check_branch
          %203 = sbr.rel (%p201) target = $region16
        $region15: #{tpu_custom_call.1} parent=11 // pred_region
          %s205 = ssub.s32 384, 384
          %206 = vsyncadd [#allocation9], %s205
          %s207 = sshll.u32 [#allocation8], 4
          %s208 = int_to_ptr.vmem [resolvable:$true] %s207
          %213 = dma.hbm_to_vmem [thread:$0]  %s2, 384, %s208, [#allocation9], 128, 128, 8
        $region16: #{tpu_custom_call.1} parent=11 // pred_fallthru
          _
        // Predicated region
        $region17: #{tpu_custom_call.1} parent=11 // pred_check
          %p214 = pneg %p66
        $region18: #{tpu_custom_call.1} parent=11 // pred_check_branch
          %216 = sbr.rel (%p214) target = $region20
        $region19: #{tpu_custom_call.1} parent=11 // pred_region
          _
        $region20: #{tpu_custom_call.1} parent=11 // pred_fallthru
          _
        // Predicated region
        $region21: #{tpu_custom_call.1} parent=11 // pred_check
          %p217 = pneg %p87
        $region22: #{tpu_custom_call.1} parent=11 // pred_check_branch
          %219 = sbr.rel (%p217) target = $region24
        $region23: #{tpu_custom_call.1} parent=11 // pred_region
          _
        $region24: #{tpu_custom_call.1} parent=11 // pred_fallthru
          _
        // Predicated region
        $region25: #{tpu_custom_call.1} parent=11 // pred_check
          %p220 = pneg %p108
        $region26: #{tpu_custom_call.1} parent=11 // pred_check_branch
          %222 = sbr.rel (%p220) target = $region28
        $region27: #{tpu_custom_call.1} parent=11 // pred_region
          _
        $region28: #{tpu_custom_call.1} parent=11 // pred_fallthru
          _
      $region12: #{tpu_custom_call.1} parent=5 // pred_fallthru
        _
      %p223 = scmp.lt.s32.totalorder %s24, 2
      // Predicated region
      $region29: #{tpu_custom_call.1} parent=5 // pred_check
        %p224 = pneg %p223
      $region30: #{tpu_custom_call.1} parent=5 // pred_check_branch
        %226 = sbr.rel (%p224) target = $region32
      $region31: #{tpu_custom_call.1} parent=5 // pred_region
        // Predicated region
        $region33: #{tpu_custom_call.1} parent=31 // pred_check
          %p227 = pneg %p128
        $region34: #{tpu_custom_call.1} parent=31 // pred_check_branch
          %229 = sbr.rel (%p227) target = $region36
        $region35: #{tpu_custom_call.1} parent=31 // pred_region
          %s230 = smul.u32 2, %s24
          %p231 = scmp.lt.s32.totalorder %s230, 3
          %s232 = scalar_select %p231, %s230, 3
          %s233 = smul.addr %s232, 8
          %s234 = scalar_lea.vmem %s6, %s233
          %s235 = smul.u32 2, %s24
        $region36: #{tpu_custom_call.1} parent=31 // pred_fallthru
          _
        // Predicated region
        $region37: #{tpu_custom_call.1} parent=31 // pred_check
          %p236 = pneg %p154
        $region38: #{tpu_custom_call.1} parent=31 // pred_check_branch
          %238 = sbr.rel (%p236) target = $region40
        $region39: #{tpu_custom_call.1} parent=31 // pred_region
          %s239 = smul.u32 2, %s24
          %p240 = scmp.lt.s32.totalorder %s239, 3
          %s241 = scalar_select %p240, %s239, 3
          %s242 = smul.addr %s241, 8
          %s243 = scalar_lea.vmem %s7, %s242
          %s244 = smul.u32 2, %s24
        $region40: #{tpu_custom_call.1} parent=31 // pred_fallthru
          _
      $region32: #{tpu_custom_call.1} parent=5 // pred_fallthru
        _
      %p245 = scmp.le.s32.totalorder 1, %s24
      %p246 = scmp.lt.s32.totalorder %s24, 3
      %p247 = pnand %p245, %p246
      %p248 = pneg %p247
      // Predicated region
      $region41: #{tpu_custom_call.1} parent=5 // pred_check
        _
      $region42: #{tpu_custom_call.1} parent=5 // pred_check_branch
        %250 = sbr.rel (%p247) target = $region44
      $region43: #{tpu_custom_call.1} parent=5 // pred_region
        %s251 = ssub.s32 %s24, 1
        // Predicated region
        $region45: #{tpu_custom_call.1} parent=43 // pred_check
          %p252 = pneg %p45
        $region46: #{tpu_custom_call.1} parent=43 // pred_check_branch
          %254 = sbr.rel (%p252) target = $region48
        $region47: #{tpu_custom_call.1} parent=43 // pred_region
          %255 = dma.done [#allocation9], 384
        $region48: #{tpu_custom_call.1} parent=43 // pred_fallthru
          _
        %p256 = pneg %p45
        %p257 = pneg %p42
        %p258 = pneg %p66
        %p259 = pneg %p63
        %p260 = pneg %p87
        %p261 = pneg %p84
        %p262 = pneg %p108
        %p263 = pneg %p105
        %s264 = smul.u32 2, %s29
        %p265 = scmp.lt.s32.totalorder %s264, 3
        %s266 = scalar_select %p265, %s264, 3
        %s267 = smul.addr %s266, 8
        %s268 = scalar_lea.vmem %s6, %s267
        %p269 = pneg %p134
        %p270 = pneg %p131
        %s271 = smul.u32 2, %s29
        %p272 = scmp.lt.s32.totalorder %s271, 3
        %s273 = scalar_select %p272, %s271, 3
        %s274 = smul.addr %s273, 8
        %s275 = scalar_lea.vmem %s7, %s274
        %p276 = pneg %p160
        %p277 = pneg %p157
        %p278 = pneg %p186
        %p279 = pneg %p183
        %s280 = sand.u32 %s173, 1
        %s281 = scalar_lea.sflag [#allocation10], %s280
        %s282 = sand.u32 %s173, 1
        %s283 = smul.addr %s282, 16
        %s284 = scalar_lea.vmem [#allocation11], %s283
        %s285 = smul.u32 2, %s29
        %p286 = scmp.lt.s32.totalorder %s285, 3
        %s287 = scalar_select %p286, %s285, 3
        %s288 = smul.addr %s287, 8
        %s289 = scalar_lea.vmem %s6, %s288
        %s290 = smul.u32 2, %s29
        %s291 = smul.u32 2, %s29
        %p292 = scmp.lt.s32.totalorder %s291, 3
        %s293 = scalar_select %p292, %s291, 3
        %s294 = smul.addr %s293, 8
        %s295 = scalar_lea.vmem %s7, %s294
        %s296 = smul.u32 2, %s29
        %s297 = smul.u32 2, %s29
        %s298 = smul.u32 %s29, 16
        %v299 = vld [vmem:[%s4] sm:$0x1]
        %v300 = vld [vmem:[%s5] sm:$0x1]
        %v301 = vld [vmem:[#allocation8] sm:$0xff]
        %v302 = vld [vmem:[#allocation8 + $0x8] sm:$0xff]
        %v303 = vld [vmem:[#allocation8 + $0x10] sm:$0xff]
        %v304 = vlaneseq
        %v305 = vand.u32 %v304, 127
        %s306 = sld [smem:[#allocation7 + %s298]]
        %s307 = scalar_lea.vmem %s1, %s306
        %p309 = scmp.lt.u32.totalorder 1, 8
        %p310 = pneg %p309
        // Predicated region
        $region49: #{tpu_custom_call.1} parent=43 // pred_check
          _
        $region50: #{tpu_custom_call.1} parent=43 // pred_check_branch
          %312 = sbr.rel (%p309) target = $region52
        $region51: #{tpu_custom_call.1} parent=43 // pred_region
          %s328 = sand.u32 1, 7
          %p329 = scmp.eq.s32.totalorder %s328, 0
          %p330 = pneg %p329
          // Predicated region
          $region64: #{tpu_custom_call.1} parent=51 // pred_check
            _
          $region65: #{tpu_custom_call.1} parent=51 // pred_check_branch
            %332 = sbr.rel (%p329) target = $region67
          $region66: #{tpu_custom_call.1} parent=51 // pred_region
            %s333 = sand.u32 1, 7
            %s334 = ssub.s32 1, %s333
            %s335 = scalar_lea.vmem %s307, %s334
            %s336 = ssub.s32 1, %s333
            %s337 = scalar_lea.vmem [#allocation2], %s336
            %s338 = sshll.u32 1, %s333
            %s339 = ssub.s32 %s338, 1
            loop: start=0, step=1, limit=1
            $region68: #{tpu_custom_call.1} parent=66 // loop_pre_header
              _
            $region69: #{tpu_custom_call.1} parent=66 // loop_header
              %s341 = sphi 0, %s345
              %p342 = scmp.ge.s32.totalorder %s341, 1
              %s346 = sphi %s335, %s335
              %s347 = sphi %s337, %s337
            $region70: #{tpu_custom_call.1} parent=66 // loop_header_branch
              %344 = sbr.rel (%p342) target = $region74
            $region71: #{tpu_custom_call.1} parent=66 // loop_body
              %v348 = vld [vmem:[%s346] sm:%s339]
              %349 = vst [vmem:[%s347] sm:%s339] %v348
            $region72: #{tpu_custom_call.1} parent=66 // loop_footer
              %s345 = sadd.s32 1, %s341
            $region73: #{tpu_custom_call.1} parent=66 // loop_footer_branch
              %340 = sbr.rel target = $region69
            $region74: #{tpu_custom_call.1} parent=66 // loop_exit
              _
          $region67: #{tpu_custom_call.1} parent=51 // pred_fallthru
            _
        $region52: #{tpu_custom_call.1} parent=43 // pred_fallthru
          _
        // Predicated region
        $region53: #{tpu_custom_call.1} parent=43 // pred_check
          %p313 = pneg %p309
        $region54: #{tpu_custom_call.1} parent=43 // pred_check_branch
          %315 = sbr.rel (%p313) target = $region56
        $region55: #{tpu_custom_call.1} parent=43 // pred_region
          %s316 = sshll.u32 1, 1
          %s317 = ssub.s32 %s316, 1
          loop: start=0, step=1, limit=1
          $region57: #{tpu_custom_call.1} parent=55 // loop_pre_header
            _
          $region58: #{tpu_custom_call.1} parent=55 // loop_header
            %s319 = sphi 0, %s323
            %p320 = scmp.ge.s32.totalorder %s319, 1
            %s324 = sphi %s307, %s307
            %s325 = sphi [#allocation2], [#allocation2]
          $region59: #{tpu_custom_call.1} parent=55 // loop_header_branch
            %322 = sbr.rel (%p320) target = $region63
          $region60: #{tpu_custom_call.1} parent=55 // loop_body
            %v326 = vld [vmem:[%s324] sm:%s317]
            %327 = vst [vmem:[%s325] sm:%s317] %v326
          $region61: #{tpu_custom_call.1} parent=55 // loop_footer
            %s323 = sadd.s32 1, %s319
          $region62: #{tpu_custom_call.1} parent=55 // loop_footer_branch
            %318 = sbr.rel target = $region58
          $region63: #{tpu_custom_call.1} parent=55 // loop_exit
            _
        $region56: #{tpu_custom_call.1} parent=43 // pred_fallthru
          _
        // Predicated region
        $region75: #{tpu_custom_call.1} parent=43 // pred_check
          _
        $region76: #{tpu_custom_call.1} parent=43 // pred_check_branch
          %352 = sbr.rel (0) target = $region78
        $region77: #{tpu_custom_call.1} parent=43 // pred_region
          %353 = vsyncadd [#allocation4], 16
        $region78: #{tpu_custom_call.1} parent=43 // pred_fallthru
          _
        %s354 = sadd.s32 %s298, 1
        %s355 = sld [smem:[#allocation7 + %s354]]
        %s356 = scalar_lea.vmem %s1, %s355
        %s357 = scalar_lea.vmem [#allocation2], 1
        %p359 = scmp.lt.u32.totalorder 1, 8
        %p360 = pneg %p359
        // Predicated region
        $region79: #{tpu_custom_call.1} parent=43 // pred_check
          _
        $region80: #{tpu_custom_call.1} parent=43 // pred_check_branch
          %362 = sbr.rel (%p359) target = $region82
        $region81: #{tpu_custom_call.1} parent=43 // pred_region
          %s378 = sand.u32 1, 7
          %p379 = scmp.eq.s32.totalorder %s378, 0
          %p380 = pneg %p379
          // Predicated region
          $region94: #{tpu_custom_call.1} parent=81 // pred_check
            _
          $region95: #{tpu_custom_call.1} parent=81 // pred_check_branch
            %382 = sbr.rel (%p379) target = $region97
          $region96: #{tpu_custom_call.1} parent=81 // pred_region
            %s383 = sand.u32 1, 7
            %s384 = ssub.s32 1, %s383
            %s385 = scalar_lea.vmem %s356, %s384
            %s386 = ssub.s32 1, %s383
            %s387 = scalar_lea.vmem %s357, %s386 [#allocation2]
            %s388 = sshll.u32 1, %s383
            %s389 = ssub.s32 %s388, 1
            loop: start=0, step=1, limit=1
            $region98: #{tpu_custom_call.1} parent=96 // loop_pre_header
              _
            $region99: #{tpu_custom_call.1} parent=96 // loop_header
              %s391 = sphi 0, %s395
              %p392 = scmp.ge.s32.totalorder %s391, 1
              %s396 = sphi %s385, %s385
              %s397 = sphi %s387, %s387
            $region100: #{tpu_custom_call.1} parent=96 // loop_header_branch
              %394 = sbr.rel (%p392) target = $region104
            $region101: #{tpu_custom_call.1} parent=96 // loop_body
              %v398 = vld [vmem:[%s396] sm:%s389]
              %399 = vst [vmem:[%s397] sm:%s389] %v398
            $region102: #{tpu_custom_call.1} parent=96 // loop_footer
              %s395 = sadd.s32 1, %s391
            $region103: #{tpu_custom_call.1} parent=96 // loop_footer_branch
              %390 = sbr.rel target = $region99
            $region104: #{tpu_custom_call.1} parent=96 // loop_exit
              _
          $region97: #{tpu_custom_call.1} parent=81 // pred_fallthru
            _
        $region82: #{tpu_custom_call.1} parent=43 // pred_fallthru
          _
        // Predicated region
        $region83: #{tpu_custom_call.1} parent=43 // pred_check
          %p363 = pneg %p359
        $region84: #{tpu_custom_call.1} parent=43 // pred_check_branch
          %365 = sbr.rel (%p363) target = $region86
        $region85: #{tpu_custom_call.1} parent=43 // pred_region
          %s366 = sshll.u32 1, 1
          %s367 = ssub.s32 %s366, 1
          loop: start=0, step=1, limit=1
          $region87: #{tpu_custom_call.1} parent=85 // loop_pre_header
            _
          $region88: #{tpu_custom_call.1} parent=85 // loop_header
            %s369 = sphi 0, %s373
            %p370 = scmp.ge.s32.totalorder %s369, 1
            %s374 = sphi %s356, %s356
            %s375 = sphi %s357, %s357
          $region89: #{tpu_custom_call.1} parent=85 // loop_header_branch
            %372 = sbr.rel (%p370) target = $region93
          $region90: #{tpu_custom_call.1} parent=85 // loop_body
            %v376 = vld [vmem:[%s374] sm:%s367]
            %377 = vst [vmem:[%s375] sm:%s367] %v376
          $region91: #{tpu_custom_call.1} parent=85 // loop_footer
            %s373 = sadd.s32 1, %s369
          $region92: #{tpu_custom_call.1} parent=85 // loop_footer_branch
            %368 = sbr.rel target = $region88
          $region93: #{tpu_custom_call.1} parent=85 // loop_exit
            _
        $region86: #{tpu_custom_call.1} parent=43 // pred_fallthru
          _
        // Predicated region
        $region105: #{tpu_custom_call.1} parent=43 // pred_check
          _
        $region106: #{tpu_custom_call.1} parent=43 // pred_check_branch
          %402 = sbr.rel (0) target = $region108
        $region107: #{tpu_custom_call.1} parent=43 // pred_region
          %403 = vsyncadd [#allocation4], 16
        $region108: #{tpu_custom_call.1} parent=43 // pred_fallthru
          _
        %s404 = sadd.s32 %s298, 2
        %s405 = sld [smem:[#allocation7 + %s404]]
        %s406 = scalar_lea.vmem %s1, %s405
        %s407 = scalar_lea.vmem [#allocation2], 2
        %p409 = scmp.lt.u32.totalorder 1, 8
        %p410 = pneg %p409
        // Predicated region
        $region109: #{tpu_custom_call.1} parent=43 // pred_check
          _
        $region110: #{tpu_custom_call.1} parent=43 // pred_check_branch
          %412 = sbr.rel (%p409) target = $region112
        $region111: #{tpu_custom_call.1} parent=43 // pred_region
          %s428 = sand.u32 1, 7
          %p429 = scmp.eq.s32.totalorder %s428, 0
          %p430 = pneg %p429
          // Predicated region
          $region124: #{tpu_custom_call.1} parent=111 // pred_check
            _
          $region125: #{tpu_custom_call.1} parent=111 // pred_check_branch
            %432 = sbr.rel (%p429) target = $region127
          $region126: #{tpu_custom_call.1} parent=111 // pred_region
            %s433 = sand.u32 1, 7
            %s434 = ssub.s32 1, %s433
            %s435 = scalar_lea.vmem %s406, %s434
            %s436 = ssub.s32 1, %s433
            %s437 = scalar_lea.vmem %s407, %s436 [#allocation2]
            %s438 = sshll.u32 1, %s433
            %s439 = ssub.s32 %s438, 1
            loop: start=0, step=1, limit=1
            $region128: #{tpu_custom_call.1} parent=126 // loop_pre_header
              _
            $region129: #{tpu_custom_call.1} parent=126 // loop_header
              %s441 = sphi 0, %s445
              %p442 = scmp.ge.s32.totalorder %s441, 1
              %s446 = sphi %s435, %s435
              %s447 = sphi %s437, %s437
            $region130: #{tpu_custom_call.1} parent=126 // loop_header_branch
              %444 = sbr.rel (%p442) target = $region134
            $region131: #{tpu_custom_call.1} parent=126 // loop_body
              %v448 = vld [vmem:[%s446] sm:%s439]
              %449 = vst [vmem:[%s447] sm:%s439] %v448
            $region132: #{tpu_custom_call.1} parent=126 // loop_footer
              %s445 = sadd.s32 1, %s441
            $region133: #{tpu_custom_call.1} parent=126 // loop_footer_branch
              %440 = sbr.rel target = $region129
            $region134: #{tpu_custom_call.1} parent=126 // loop_exit
              _
          $region127: #{tpu_custom_call.1} parent=111 // pred_fallthru
            _
        $region112: #{tpu_custom_call.1} parent=43 // pred_fallthru
          _
        // Predicated region
        $region113: #{tpu_custom_call.1} parent=43 // pred_check
          %p413 = pneg %p409
        $region114: #{tpu_custom_call.1} parent=43 // pred_check_branch
          %415 = sbr.rel (%p413) target = $region116
        $region115: #{tpu_custom_call.1} parent=43 // pred_region
          %s416 = sshll.u32 1, 1
          %s417 = ssub.s32 %s416, 1
          loop: start=0, step=1, limit=1
          $region117: #{tpu_custom_call.1} parent=115 // loop_pre_header
            _
          $region118: #{tpu_custom_call.1} parent=115 // loop_header
            %s419 = sphi 0, %s423
            %p420 = scmp.ge.s32.totalorder %s419, 1
            %s424 = sphi %s406, %s406
            %s425 = sphi %s407, %s407
          $region119: #{tpu_custom_call.1} parent=115 // loop_header_branch
            %422 = sbr.rel (%p420) target = $region123
          $region120: #{tpu_custom_call.1} parent=115 // loop_body
            %v426 = vld [vmem:[%s424] sm:%s417]
            %427 = vst [vmem:[%s425] sm:%s417] %v426
          $region121: #{tpu_custom_call.1} parent=115 // loop_footer
            %s423 = sadd.s32 1, %s419
          $region122: #{tpu_custom_call.1} parent=115 // loop_footer_branch
            %418 = sbr.rel target = $region118
          $region123: #{tpu_custom_call.1} parent=115 // loop_exit
            _
        $region116: #{tpu_custom_call.1} parent=43 // pred_fallthru
          _
        // Predicated region
        $region135: #{tpu_custom_call.1} parent=43 // pred_check
          _
        $region136: #{tpu_custom_call.1} parent=43 // pred_check_branch
          %452 = sbr.rel (0) target = $region138
        $region137: #{tpu_custom_call.1} parent=43 // pred_region
          %453 = vsyncadd [#allocation4], 16
        $region138: #{tpu_custom_call.1} parent=43 // pred_fallthru
          _
        %s454 = sadd.s32 %s298, 3
        %s455 = sld [smem:[#allocation7 + %s454]]
        %s456 = scalar_lea.vmem %s1, %s455
        %s457 = scalar_lea.vmem [#allocation2], 3
        %p459 = scmp.lt.u32.totalorder 1, 8
        %p460 = pneg %p459
        // Predicated region
        $region139: #{tpu_custom_call.1} parent=43 // pred_check
          _
        $region140: #{tpu_custom_call.1} parent=43 // pred_check_branch
          %462 = sbr.rel (%p459) target = $region142
        $region141: #{tpu_custom_call.1} parent=43 // pred_region
          %s478 = sand.u32 1, 7
          %p479 = scmp.eq.s32.totalorder %s478, 0
          %p480 = pneg %p479
          // Predicated region
          $region154: #{tpu_custom_call.1} parent=141 // pred_check
            _
          $region155: #{tpu_custom_call.1} parent=141 // pred_check_branch
            %482 = sbr.rel (%p479) target = $region157
          $region156: #{tpu_custom_call.1} parent=141 // pred_region
            %s483 = sand.u32 1, 7
            %s484 = ssub.s32 1, %s483
            %s485 = scalar_lea.vmem %s456, %s484
            %s486 = ssub.s32 1, %s483
            %s487 = scalar_lea.vmem %s457, %s486 [#allocation2]
            %s488 = sshll.u32 1, %s483
            %s489 = ssub.s32 %s488, 1
            loop: start=0, step=1, limit=1
            $region158: #{tpu_custom_call.1} parent=156 // loop_pre_header
              _
            $region159: #{tpu_custom_call.1} parent=156 // loop_header
              %s491 = sphi 0, %s495
              %p492 = scmp.ge.s32.totalorder %s491, 1
              %s496 = sphi %s485, %s485
              %s497 = sphi %s487, %s487
            $region160: #{tpu_custom_call.1} parent=156 // loop_header_branch
              %494 = sbr.rel (%p492) target = $region164
            $region161: #{tpu_custom_call.1} parent=156 // loop_body
              %v498 = vld [vmem:[%s496] sm:%s489]
              %499 = vst [vmem:[%s497] sm:%s489] %v498
            $region162: #{tpu_custom_call.1} parent=156 // loop_footer
              %s495 = sadd.s32 1, %s491
            $region163: #{tpu_custom_call.1} parent=156 // loop_footer_branch
              %490 = sbr.rel target = $region159
            $region164: #{tpu_custom_call.1} parent=156 // loop_exit
              _
          $region157: #{tpu_custom_call.1} parent=141 // pred_fallthru
            _
        $region142: #{tpu_custom_call.1} parent=43 // pred_fallthru
          _
        // Predicated region
        $region143: #{tpu_custom_call.1} parent=43 // pred_check
          %p463 = pneg %p459
        $region144: #{tpu_custom_call.1} parent=43 // pred_check_branch
          %465 = sbr.rel (%p463) target = $region146
        $region145: #{tpu_custom_call.1} parent=43 // pred_region
          %s466 = sshll.u32 1, 1
          %s467 = ssub.s32 %s466, 1
          loop: start=0, step=1, limit=1
          $region147: #{tpu_custom_call.1} parent=145 // loop_pre_header
            _
          $region148: #{tpu_custom_call.1} parent=145 // loop_header
            %s469 = sphi 0, %s473
            %p470 = scmp.ge.s32.totalorder %s469, 1
            %s474 = sphi %s456, %s456
            %s475 = sphi %s457, %s457
          $region149: #{tpu_custom_call.1} parent=145 // loop_header_branch
            %472 = sbr.rel (%p470) target = $region153
          $region150: #{tpu_custom_call.1} parent=145 // loop_body
            %v476 = vld [vmem:[%s474] sm:%s467]
            %477 = vst [vmem:[%s475] sm:%s467] %v476
          $region151: #{tpu_custom_call.1} parent=145 // loop_footer
            %s473 = sadd.s32 1, %s469
          $region152: #{tpu_custom_call.1} parent=145 // loop_footer_branch
            %468 = sbr.rel target = $region148
          $region153: #{tpu_custom_call.1} parent=145 // loop_exit
            _
        $region146: #{tpu_custom_call.1} parent=43 // pred_fallthru
          _
        // Predicated region
        $region165: #{tpu_custom_call.1} parent=43 // pred_check
          _
        $region166: #{tpu_custom_call.1} parent=43 // pred_check_branch
          %502 = sbr.rel (0) target = $region168
        $region167: #{tpu_custom_call.1} parent=43 // pred_region
          %503 = vsyncadd [#allocation4], 16
        $region168: #{tpu_custom_call.1} parent=43 // pred_fallthru
          _
        %s504 = sadd.s32 %s298, 4
        %s505 = sld [smem:[#allocation7 + %s504]]
        %s506 = scalar_lea.vmem %s1, %s505
        %s507 = scalar_lea.vmem [#allocation2], 4
        %p509 = scmp.lt.u32.totalorder 1, 8
        %p510 = pneg %p509
        // Predicated region
        $region169: #{tpu_custom_call.1} parent=43 // pred_check
          _
        $region170: #{tpu_custom_call.1} parent=43 // pred_check_branch
          %512 = sbr.rel (%p509) target = $region172
        $region171: #{tpu_custom_call.1} parent=43 // pred_region
          %s528 = sand.u32 1, 7
          %p529 = scmp.eq.s32.totalorder %s528, 0
          %p530 = pneg %p529
          // Predicated region
          $region184: #{tpu_custom_call.1} parent=171 // pred_check
            _
          $region185: #{tpu_custom_call.1} parent=171 // pred_check_branch
            %532 = sbr.rel (%p529) target = $region187
          $region186: #{tpu_custom_call.1} parent=171 // pred_region
            %s533 = sand.u32 1, 7
            %s534 = ssub.s32 1, %s533
            %s535 = scalar_lea.vmem %s506, %s534
            %s536 = ssub.s32 1, %s533
            %s537 = scalar_lea.vmem %s507, %s536 [#allocation2]
            %s538 = sshll.u32 1, %s533
            %s539 = ssub.s32 %s538, 1
            loop: start=0, step=1, limit=1
            $region188: #{tpu_custom_call.1} parent=186 // loop_pre_header
              _
            $region189: #{tpu_custom_call.1} parent=186 // loop_header
              %s541 = sphi 0, %s545
              %p542 = scmp.ge.s32.totalorder %s541, 1
              %s546 = sphi %s535, %s535
              %s547 = sphi %s537, %s537
            $region190: #{tpu_custom_call.1} parent=186 // loop_header_branch
              %544 = sbr.rel (%p542) target = $region194
            $region191: #{tpu_custom_call.1} parent=186 // loop_body
              %v548 = vld [vmem:[%s546] sm:%s539]
              %549 = vst [vmem:[%s547] sm:%s539] %v548
            $region192: #{tpu_custom_call.1} parent=186 // loop_footer
              %s545 = sadd.s32 1, %s541
            $region193: #{tpu_custom_call.1} parent=186 // loop_footer_branch
              %540 = sbr.rel target = $region189
            $region194: #{tpu_custom_call.1} parent=186 // loop_exit
              _
          $region187: #{tpu_custom_call.1} parent=171 // pred_fallthru
            _
        $region172: #{tpu_custom_call.1} parent=43 // pred_fallthru
          _
        // Predicated region
        $region173: #{tpu_custom_call.1} parent=43 // pred_check
          %p513 = pneg %p509
        $region174: #{tpu_custom_call.1} parent=43 // pred_check_branch
          %515 = sbr.rel (%p513) target = $region176
        $region175: #{tpu_custom_call.1} parent=43 // pred_region
          %s516 = sshll.u32 1, 1
          %s517 = ssub.s32 %s516, 1
          loop: start=0, step=1, limit=1
          $region177: #{tpu_custom_call.1} parent=175 // loop_pre_header
            _
          $region178: #{tpu_custom_call.1} parent=175 // loop_header
            %s519 = sphi 0, %s523
            %p520 = scmp.ge.s32.totalorder %s519, 1
            %s524 = sphi %s506, %s506
            %s525 = sphi %s507, %s507
          $region179: #{tpu_custom_call.1} parent=175 // loop_header_branch
            %522 = sbr.rel (%p520) target = $region183
          $region180: #{tpu_custom_call.1} parent=175 // loop_body
            %v526 = vld [vmem:[%s524] sm:%s517]
            %527 = vst [vmem:[%s525] sm:%s517] %v526
          $region181: #{tpu_custom_call.1} parent=175 // loop_footer
            %s523 = sadd.s32 1, %s519
          $region182: #{tpu_custom_call.1} parent=175 // loop_footer_branch
            %518 = sbr.rel target = $region178
          $region183: #{tpu_custom_call.1} parent=175 // loop_exit
            _
        $region176: #{tpu_custom_call.1} parent=43 // pred_fallthru
          _
        // Predicated region
        $region195: #{tpu_custom_call.1} parent=43 // pred_check
          _
        $region196: #{tpu_custom_call.1} parent=43 // pred_check_branch
          %552 = sbr.rel (0) target = $region198
        $region197: #{tpu_custom_call.1} parent=43 // pred_region
          %553 = vsyncadd [#allocation4], 16
        $region198: #{tpu_custom_call.1} parent=43 // pred_fallthru
          _
        %s554 = sadd.s32 %s298, 5
        %s555 = sld [smem:[#allocation7 + %s554]]
        %s556 = scalar_lea.vmem %s1, %s555
        %s557 = scalar_lea.vmem [#allocation2], 5
        %p559 = scmp.lt.u32.totalorder 1, 8
        %p560 = pneg %p559
        // Predicated region
        $region199: #{tpu_custom_call.1} parent=43 // pred_check
          _
        $region200: #{tpu_custom_call.1} parent=43 // pred_check_branch
          %562 = sbr.rel (%p559) target = $region202
        $region201: #{tpu_custom_call.1} parent=43 // pred_region
          %s578 = sand.u32 1, 7
          %p579 = scmp.eq.s32.totalorder %s578, 0
          %p580 = pneg %p579
          // Predicated region
          $region214: #{tpu_custom_call.1} parent=201 // pred_check
            _
          $region215: #{tpu_custom_call.1} parent=201 // pred_check_branch
            %582 = sbr.rel (%p579) target = $region217
          $region216: #{tpu_custom_call.1} parent=201 // pred_region
            %s583 = sand.u32 1, 7
            %s584 = ssub.s32 1, %s583
            %s585 = scalar_lea.vmem %s556, %s584
            %s586 = ssub.s32 1, %s583
            %s587 = scalar_lea.vmem %s557, %s586 [#allocation2]
            %s588 = sshll.u32 1, %s583
            %s589 = ssub.s32 %s588, 1
            loop: start=0, step=1, limit=1
            $region218: #{tpu_custom_call.1} parent=216 // loop_pre_header
              _
            $region219: #{tpu_custom_call.1} parent=216 // loop_header
              %s591 = sphi 0, %s595
              %p592 = scmp.ge.s32.totalorder %s591, 1
              %s596 = sphi %s585, %s585
              %s597 = sphi %s587, %s587
            $region220: #{tpu_custom_call.1} parent=216 // loop_header_branch
              %594 = sbr.rel (%p592) target = $region224
            $region221: #{tpu_custom_call.1} parent=216 // loop_body
              %v598 = vld [vmem:[%s596] sm:%s589]
              %599 = vst [vmem:[%s597] sm:%s589] %v598
            $region222: #{tpu_custom_call.1} parent=216 // loop_footer
              %s595 = sadd.s32 1, %s591
            $region223: #{tpu_custom_call.1} parent=216 // loop_footer_branch
              %590 = sbr.rel target = $region219
            $region224: #{tpu_custom_call.1} parent=216 // loop_exit
              _
          $region217: #{tpu_custom_call.1} parent=201 // pred_fallthru
            _
        $region202: #{tpu_custom_call.1} parent=43 // pred_fallthru
          _
        // Predicated region
        $region203: #{tpu_custom_call.1} parent=43 // pred_check
          %p563 = pneg %p559
        $region204: #{tpu_custom_call.1} parent=43 // pred_check_branch
          %565 = sbr.rel (%p563) target = $region206
        $region205: #{tpu_custom_call.1} parent=43 // pred_region
          %s566 = sshll.u32 1, 1
          %s567 = ssub.s32 %s566, 1
          loop: start=0, step=1, limit=1
          $region207: #{tpu_custom_call.1} parent=205 // loop_pre_header
            _
          $region208: #{tpu_custom_call.1} parent=205 // loop_header
            %s569 = sphi 0, %s573
            %p570 = scmp.ge.s32.totalorder %s569, 1
            %s574 = sphi %s556, %s556
            %s575 = sphi %s557, %s557
          $region209: #{tpu_custom_call.1} parent=205 // loop_header_branch
            %572 = sbr.rel (%p570) target = $region213
          $region210: #{tpu_custom_call.1} parent=205 // loop_body
            %v576 = vld [vmem:[%s574] sm:%s567]
            %577 = vst [vmem:[%s575] sm:%s567] %v576
          $region211: #{tpu_custom_call.1} parent=205 // loop_footer
            %s573 = sadd.s32 1, %s569
          $region212: #{tpu_custom_call.1} parent=205 // loop_footer_branch
            %568 = sbr.rel target = $region208
          $region213: #{tpu_custom_call.1} parent=205 // loop_exit
            _
        $region206: #{tpu_custom_call.1} parent=43 // pred_fallthru
          _
        // Predicated region
        $region225: #{tpu_custom_call.1} parent=43 // pred_check
          _
        $region226: #{tpu_custom_call.1} parent=43 // pred_check_branch
          %602 = sbr.rel (0) target = $region228
        $region227: #{tpu_custom_call.1} parent=43 // pred_region
          %603 = vsyncadd [#allocation4], 16
        $region228: #{tpu_custom_call.1} parent=43 // pred_fallthru
          _
        %s604 = sadd.s32 %s298, 6
        %s605 = sld [smem:[#allocation7 + %s604]]
        %s606 = scalar_lea.vmem %s1, %s605
        %s607 = scalar_lea.vmem [#allocation2], 6
        %p609 = scmp.lt.u32.totalorder 1, 8
        %p610 = pneg %p609
        // Predicated region
        $region229: #{tpu_custom_call.1} parent=43 // pred_check
          _
        $region230: #{tpu_custom_call.1} parent=43 // pred_check_branch
          %612 = sbr.rel (%p609) target = $region232
        $region231: #{tpu_custom_call.1} parent=43 // pred_region
          %s628 = sand.u32 1, 7
          %p629 = scmp.eq.s32.totalorder %s628, 0
          %p630 = pneg %p629
          // Predicated region
          $region244: #{tpu_custom_call.1} parent=231 // pred_check
            _
          $region245: #{tpu_custom_call.1} parent=231 // pred_check_branch
            %632 = sbr.rel (%p629) target = $region247
          $region246: #{tpu_custom_call.1} parent=231 // pred_region
            %s633 = sand.u32 1, 7
            %s634 = ssub.s32 1, %s633
            %s635 = scalar_lea.vmem %s606, %s634
            %s636 = ssub.s32 1, %s633
            %s637 = scalar_lea.vmem %s607, %s636 [#allocation2]
            %s638 = sshll.u32 1, %s633
            %s639 = ssub.s32 %s638, 1
            loop: start=0, step=1, limit=1
            $region248: #{tpu_custom_call.1} parent=246 // loop_pre_header
              _
            $region249: #{tpu_custom_call.1} parent=246 // loop_header
              %s641 = sphi 0, %s645
              %p642 = scmp.ge.s32.totalorder %s641, 1
              %s646 = sphi %s635, %s635
              %s647 = sphi %s637, %s637
            $region250: #{tpu_custom_call.1} parent=246 // loop_header_branch
              %644 = sbr.rel (%p642) target = $region254
            $region251: #{tpu_custom_call.1} parent=246 // loop_body
              %v648 = vld [vmem:[%s646] sm:%s639]
              %649 = vst [vmem:[%s647] sm:%s639] %v648
            $region252: #{tpu_custom_call.1} parent=246 // loop_footer
              %s645 = sadd.s32 1, %s641
            $region253: #{tpu_custom_call.1} parent=246 // loop_footer_branch
              %640 = sbr.rel target = $region249
            $region254: #{tpu_custom_call.1} parent=246 // loop_exit
              _
          $region247: #{tpu_custom_call.1} parent=231 // pred_fallthru
            _
        $region232: #{tpu_custom_call.1} parent=43 // pred_fallthru
          _
        // Predicated region
        $region233: #{tpu_custom_call.1} parent=43 // pred_check
          %p613 = pneg %p609
        $region234: #{tpu_custom_call.1} parent=43 // pred_check_branch
          %615 = sbr.rel (%p613) target = $region236
        $region235: #{tpu_custom_call.1} parent=43 // pred_region
          %s616 = sshll.u32 1, 1
          %s617 = ssub.s32 %s616, 1
          loop: start=0, step=1, limit=1
          $region237: #{tpu_custom_call.1} parent=235 // loop_pre_header
            _
          $region238: #{tpu_custom_call.1} parent=235 // loop_header
            %s619 = sphi 0, %s623
            %p620 = scmp.ge.s32.totalorder %s619, 1
            %s624 = sphi %s606, %s606
            %s625 = sphi %s607, %s607
          $region239: #{tpu_custom_call.1} parent=235 // loop_header_branch
            %622 = sbr.rel (%p620) target = $region243
          $region240: #{tpu_custom_call.1} parent=235 // loop_body
            %v626 = vld [vmem:[%s624] sm:%s617]
            %627 = vst [vmem:[%s625] sm:%s617] %v626
          $region241: #{tpu_custom_call.1} parent=235 // loop_footer
            %s623 = sadd.s32 1, %s619
          $region242: #{tpu_custom_call.1} parent=235 // loop_footer_branch
            %618 = sbr.rel target = $region238
          $region243: #{tpu_custom_call.1} parent=235 // loop_exit
            _
        $region236: #{tpu_custom_call.1} parent=43 // pred_fallthru
          _
        // Predicated region
        $region255: #{tpu_custom_call.1} parent=43 // pred_check
          _
        $region256: #{tpu_custom_call.1} parent=43 // pred_check_branch
          %652 = sbr.rel (0) target = $region258
        $region257: #{tpu_custom_call.1} parent=43 // pred_region
          %653 = vsyncadd [#allocation4], 16
        $region258: #{tpu_custom_call.1} parent=43 // pred_fallthru
          _
        %s654 = sadd.s32 %s298, 7
        %s655 = sld [smem:[#allocation7 + %s654]]
        %s656 = scalar_lea.vmem %s1, %s655
        %s657 = scalar_lea.vmem [#allocation2], 7
        %p659 = scmp.lt.u32.totalorder 1, 8
        %p660 = pneg %p659
        // Predicated region
        $region259: #{tpu_custom_call.1} parent=43 // pred_check
          _
        $region260: #{tpu_custom_call.1} parent=43 // pred_check_branch
          %662 = sbr.rel (%p659) target = $region262
        $region261: #{tpu_custom_call.1} parent=43 // pred_region
          %s678 = sand.u32 1, 7
          %p679 = scmp.eq.s32.totalorder %s678, 0
          %p680 = pneg %p679
          // Predicated region
          $region274: #{tpu_custom_call.1} parent=261 // pred_check
            _
          $region275: #{tpu_custom_call.1} parent=261 // pred_check_branch
            %682 = sbr.rel (%p679) target = $region277
          $region276: #{tpu_custom_call.1} parent=261 // pred_region
            %s683 = sand.u32 1, 7
            %s684 = ssub.s32 1, %s683
            %s685 = scalar_lea.vmem %s656, %s684
            %s686 = ssub.s32 1, %s683
            %s687 = scalar_lea.vmem %s657, %s686 [#allocation2]
            %s688 = sshll.u32 1, %s683
            %s689 = ssub.s32 %s688, 1
            loop: start=0, step=1, limit=1
            $region278: #{tpu_custom_call.1} parent=276 // loop_pre_header
              _
            $region279: #{tpu_custom_call.1} parent=276 // loop_header
              %s691 = sphi 0, %s695
              %p692 = scmp.ge.s32.totalorder %s691, 1
              %s696 = sphi %s685, %s685
              %s697 = sphi %s687, %s687
            $region280: #{tpu_custom_call.1} parent=276 // loop_header_branch
              %694 = sbr.rel (%p692) target = $region284
            $region281: #{tpu_custom_call.1} parent=276 // loop_body
              %v698 = vld [vmem:[%s696] sm:%s689]
              %699 = vst [vmem:[%s697] sm:%s689] %v698
            $region282: #{tpu_custom_call.1} parent=276 // loop_footer
              %s695 = sadd.s32 1, %s691
            $region283: #{tpu_custom_call.1} parent=276 // loop_footer_branch
              %690 = sbr.rel target = $region279
            $region284: #{tpu_custom_call.1} parent=276 // loop_exit
              _
          $region277: #{tpu_custom_call.1} parent=261 // pred_fallthru
            _
        $region262: #{tpu_custom_call.1} parent=43 // pred_fallthru
          _
        // Predicated region
        $region263: #{tpu_custom_call.1} parent=43 // pred_check
          %p663 = pneg %p659
        $region264: #{tpu_custom_call.1} parent=43 // pred_check_branch
          %665 = sbr.rel (%p663) target = $region266
        $region265: #{tpu_custom_call.1} parent=43 // pred_region
          %s666 = sshll.u32 1, 1
          %s667 = ssub.s32 %s666, 1
          loop: start=0, step=1, limit=1
          $region267: #{tpu_custom_call.1} parent=265 // loop_pre_header
            _
          $region268: #{tpu_custom_call.1} parent=265 // loop_header
            %s669 = sphi 0, %s673
            %p670 = scmp.ge.s32.totalorder %s669, 1
            %s674 = sphi %s656, %s656
            %s675 = sphi %s657, %s657
          $region269: #{tpu_custom_call.1} parent=265 // loop_header_branch
            %672 = sbr.rel (%p670) target = $region273
          $region270: #{tpu_custom_call.1} parent=265 // loop_body
            %v676 = vld [vmem:[%s674] sm:%s667]
            %677 = vst [vmem:[%s675] sm:%s667] %v676
          $region271: #{tpu_custom_call.1} parent=265 // loop_footer
            %s673 = sadd.s32 1, %s669
          $region272: #{tpu_custom_call.1} parent=265 // loop_footer_branch
            %668 = sbr.rel target = $region268
          $region273: #{tpu_custom_call.1} parent=265 // loop_exit
            _
        $region266: #{tpu_custom_call.1} parent=43 // pred_fallthru
          _
        // Predicated region
        $region285: #{tpu_custom_call.1} parent=43 // pred_check
          _
        $region286: #{tpu_custom_call.1} parent=43 // pred_check_branch
          %702 = sbr.rel (0) target = $region288
        $region287: #{tpu_custom_call.1} parent=43 // pred_region
          %703 = vsyncadd [#allocation4], 16
        $region288: #{tpu_custom_call.1} parent=43 // pred_fallthru
          _
        %s704 = sadd.s32 %s298, 8
        %s705 = sld [smem:[#allocation7 + %s704]]
        %s706 = scalar_lea.vmem %s1, %s705
        %p708 = scmp.lt.u32.totalorder 1, 8
        %p709 = pneg %p708
        // Predicated region
        $region289: #{tpu_custom_call.1} parent=43 // pred_check
          _
        $region290: #{tpu_custom_call.1} parent=43 // pred_check_branch
          %711 = sbr.rel (%p708) target = $region292
        $region291: #{tpu_custom_call.1} parent=43 // pred_region
          %s727 = sand.u32 1, 7
          %p728 = scmp.eq.s32.totalorder %s727, 0
          %p729 = pneg %p728
          // Predicated region
          $region304: #{tpu_custom_call.1} parent=291 // pred_check
            _
          $region305: #{tpu_custom_call.1} parent=291 // pred_check_branch
            %731 = sbr.rel (%p728) target = $region307
          $region306: #{tpu_custom_call.1} parent=291 // pred_region
            %s732 = sand.u32 1, 7
            %s733 = ssub.s32 1, %s732
            %s734 = scalar_lea.vmem %s706, %s733
            %s735 = ssub.s32 1, %s732
            %s736 = scalar_lea.vmem [#allocation3], %s735
            %s737 = sshll.u32 1, %s732
            %s738 = ssub.s32 %s737, 1
            loop: start=0, step=1, limit=1
            $region308: #{tpu_custom_call.1} parent=306 // loop_pre_header
              _
            $region309: #{tpu_custom_call.1} parent=306 // loop_header
              %s740 = sphi 0, %s744
              %p741 = scmp.ge.s32.totalorder %s740, 1
              %s745 = sphi %s734, %s734
              %s746 = sphi %s736, %s736
            $region310: #{tpu_custom_call.1} parent=306 // loop_header_branch
              %743 = sbr.rel (%p741) target = $region314
            $region311: #{tpu_custom_call.1} parent=306 // loop_body
              %v747 = vld [vmem:[%s745] sm:%s738]
              %748 = vst [vmem:[%s746] sm:%s738] %v747
            $region312: #{tpu_custom_call.1} parent=306 // loop_footer
              %s744 = sadd.s32 1, %s740
            $region313: #{tpu_custom_call.1} parent=306 // loop_footer_branch
              %739 = sbr.rel target = $region309
            $region314: #{tpu_custom_call.1} parent=306 // loop_exit
              _
          $region307: #{tpu_custom_call.1} parent=291 // pred_fallthru
            _
        $region292: #{tpu_custom_call.1} parent=43 // pred_fallthru
          _
        // Predicated region
        $region293: #{tpu_custom_call.1} parent=43 // pred_check
          %p712 = pneg %p708
        $region294: #{tpu_custom_call.1} parent=43 // pred_check_branch
          %714 = sbr.rel (%p712) target = $region296
        $region295: #{tpu_custom_call.1} parent=43 // pred_region
          %s715 = sshll.u32 1, 1
          %s716 = ssub.s32 %s715, 1
          loop: start=0, step=1, limit=1
          $region297: #{tpu_custom_call.1} parent=295 // loop_pre_header
            _
          $region298: #{tpu_custom_call.1} parent=295 // loop_header
            %s718 = sphi 0, %s722
            %p719 = scmp.ge.s32.totalorder %s718, 1
            %s723 = sphi %s706, %s706
            %s724 = sphi [#allocation3], [#allocation3]
          $region299: #{tpu_custom_call.1} parent=295 // loop_header_branch
            %721 = sbr.rel (%p719) target = $region303
          $region300: #{tpu_custom_call.1} parent=295 // loop_body
            %v725 = vld [vmem:[%s723] sm:%s716]
            %726 = vst [vmem:[%s724] sm:%s716] %v725
          $region301: #{tpu_custom_call.1} parent=295 // loop_footer
            %s722 = sadd.s32 1, %s718
          $region302: #{tpu_custom_call.1} parent=295 // loop_footer_branch
            %717 = sbr.rel target = $region298
          $region303: #{tpu_custom_call.1} parent=295 // loop_exit
            _
        $region296: #{tpu_custom_call.1} parent=43 // pred_fallthru
          _
        // Predicated region
        $region315: #{tpu_custom_call.1} parent=43 // pred_check
          _
        $region316: #{tpu_custom_call.1} parent=43 // pred_check_branch
          %751 = sbr.rel (0) target = $region318
        $region317: #{tpu_custom_call.1} parent=43 // pred_region
          %752 = vsyncadd [#allocation5], 16
        $region318: #{tpu_custom_call.1} parent=43 // pred_fallthru
          _
        %s753 = sadd.s32 %s298, 9
        %s754 = sld [smem:[#allocation7 + %s753]]
        %s755 = scalar_lea.vmem %s1, %s754
        %s756 = scalar_lea.vmem [#allocation3], 1
        %p758 = scmp.lt.u32.totalorder 1, 8
        %p759 = pneg %p758
        // Predicated region
        $region319: #{tpu_custom_call.1} parent=43 // pred_check
          _
        $region320: #{tpu_custom_call.1} parent=43 // pred_check_branch
          %761 = sbr.rel (%p758) target = $region322
        $region321: #{tpu_custom_call.1} parent=43 // pred_region
          %s777 = sand.u32 1, 7
          %p778 = scmp.eq.s32.totalorder %s777, 0
          %p779 = pneg %p778
          // Predicated region
          $region334: #{tpu_custom_call.1} parent=321 // pred_check
            _
          $region335: #{tpu_custom_call.1} parent=321 // pred_check_branch
            %781 = sbr.rel (%p778) target = $region337
          $region336: #{tpu_custom_call.1} parent=321 // pred_region
            %s782 = sand.u32 1, 7
            %s783 = ssub.s32 1, %s782
            %s784 = scalar_lea.vmem %s755, %s783
            %s785 = ssub.s32 1, %s782
            %s786 = scalar_lea.vmem %s756, %s785 [#allocation3]
            %s787 = sshll.u32 1, %s782
            %s788 = ssub.s32 %s787, 1
            loop: start=0, step=1, limit=1
            $region338: #{tpu_custom_call.1} parent=336 // loop_pre_header
              _
            $region339: #{tpu_custom_call.1} parent=336 // loop_header
              %s790 = sphi 0, %s794
              %p791 = scmp.ge.s32.totalorder %s790, 1
              %s795 = sphi %s784, %s784
              %s796 = sphi %s786, %s786
            $region340: #{tpu_custom_call.1} parent=336 // loop_header_branch
              %793 = sbr.rel (%p791) target = $region344
            $region341: #{tpu_custom_call.1} parent=336 // loop_body
              %v797 = vld [vmem:[%s795] sm:%s788]
              %798 = vst [vmem:[%s796] sm:%s788] %v797
            $region342: #{tpu_custom_call.1} parent=336 // loop_footer
              %s794 = sadd.s32 1, %s790
            $region343: #{tpu_custom_call.1} parent=336 // loop_footer_branch
              %789 = sbr.rel target = $region339
            $region344: #{tpu_custom_call.1} parent=336 // loop_exit
              _
          $region337: #{tpu_custom_call.1} parent=321 // pred_fallthru
            _
        $region322: #{tpu_custom_call.1} parent=43 // pred_fallthru
          _
        // Predicated region
        $region323: #{tpu_custom_call.1} parent=43 // pred_check
          %p762 = pneg %p758
        $region324: #{tpu_custom_call.1} parent=43 // pred_check_branch
          %764 = sbr.rel (%p762) target = $region326
        $region325: #{tpu_custom_call.1} parent=43 // pred_region
          %s765 = sshll.u32 1, 1
          %s766 = ssub.s32 %s765, 1
          loop: start=0, step=1, limit=1
          $region327: #{tpu_custom_call.1} parent=325 // loop_pre_header
            _
          $region328: #{tpu_custom_call.1} parent=325 // loop_header
            %s768 = sphi 0, %s772
            %p769 = scmp.ge.s32.totalorder %s768, 1
            %s773 = sphi %s755, %s755
            %s774 = sphi %s756, %s756
          $region329: #{tpu_custom_call.1} parent=325 // loop_header_branch
            %771 = sbr.rel (%p769) target = $region333
          $region330: #{tpu_custom_call.1} parent=325 // loop_body
            %v775 = vld [vmem:[%s773] sm:%s766]
            %776 = vst [vmem:[%s774] sm:%s766] %v775
          $region331: #{tpu_custom_call.1} parent=325 // loop_footer
            %s772 = sadd.s32 1, %s768
          $region332: #{tpu_custom_call.1} parent=325 // loop_footer_branch
            %767 = sbr.rel target = $region328
          $region333: #{tpu_custom_call.1} parent=325 // loop_exit
            _
        $region326: #{tpu_custom_call.1} parent=43 // pred_fallthru
          _
        // Predicated region
        $region345: #{tpu_custom_call.1} parent=43 // pred_check
          _
        $region346: #{tpu_custom_call.1} parent=43 // pred_check_branch
          %801 = sbr.rel (0) target = $region348
        $region347: #{tpu_custom_call.1} parent=43 // pred_region
          %802 = vsyncadd [#allocation5], 16
        $region348: #{tpu_custom_call.1} parent=43 // pred_fallthru
          _
        %s803 = sadd.s32 %s298, 10
        %s804 = sld [smem:[#allocation7 + %s803]]
        %s805 = scalar_lea.vmem %s1, %s804
        %s806 = scalar_lea.vmem [#allocation3], 2
        %p808 = scmp.lt.u32.totalorder 1, 8
        %p809 = pneg %p808
        // Predicated region
        $region349: #{tpu_custom_call.1} parent=43 // pred_check
          _
        $region350: #{tpu_custom_call.1} parent=43 // pred_check_branch
          %811 = sbr.rel (%p808) target = $region352
        $region351: #{tpu_custom_call.1} parent=43 // pred_region
          %s827 = sand.u32 1, 7
          %p828 = scmp.eq.s32.totalorder %s827, 0
          %p829 = pneg %p828
          // Predicated region
          $region364: #{tpu_custom_call.1} parent=351 // pred_check
            _
          $region365: #{tpu_custom_call.1} parent=351 // pred_check_branch
            %831 = sbr.rel (%p828) target = $region367
          $region366: #{tpu_custom_call.1} parent=351 // pred_region
            %s832 = sand.u32 1, 7
            %s833 = ssub.s32 1, %s832
            %s834 = scalar_lea.vmem %s805, %s833
            %s835 = ssub.s32 1, %s832
            %s836 = scalar_lea.vmem %s806, %s835 [#allocation3]
            %s837 = sshll.u32 1, %s832
            %s838 = ssub.s32 %s837, 1
            loop: start=0, step=1, limit=1
            $region368: #{tpu_custom_call.1} parent=366 // loop_pre_header
              _
            $region369: #{tpu_custom_call.1} parent=366 // loop_header
              %s840 = sphi 0, %s844
              %p841 = scmp.ge.s32.totalorder %s840, 1
              %s845 = sphi %s834, %s834
              %s846 = sphi %s836, %s836
            $region370: #{tpu_custom_call.1} parent=366 // loop_header_branch
              %843 = sbr.rel (%p841) target = $region374
            $region371: #{tpu_custom_call.1} parent=366 // loop_body
              %v847 = vld [vmem:[%s845] sm:%s838]
              %848 = vst [vmem:[%s846] sm:%s838] %v847
            $region372: #{tpu_custom_call.1} parent=366 // loop_footer
              %s844 = sadd.s32 1, %s840
            $region373: #{tpu_custom_call.1} parent=366 // loop_footer_branch
              %839 = sbr.rel target = $region369
            $region374: #{tpu_custom_call.1} parent=366 // loop_exit
              _
          $region367: #{tpu_custom_call.1} parent=351 // pred_fallthru
            _
        $region352: #{tpu_custom_call.1} parent=43 // pred_fallthru
          _
        // Predicated region
        $region353: #{tpu_custom_call.1} parent=43 // pred_check
          %p812 = pneg %p808
        $region354: #{tpu_custom_call.1} parent=43 // pred_check_branch
          %814 = sbr.rel (%p812) target = $region356
        $region355: #{tpu_custom_call.1} parent=43 // pred_region
          %s815 = sshll.u32 1, 1
          %s816 = ssub.s32 %s815, 1
          loop: start=0, step=1, limit=1
          $region357: #{tpu_custom_call.1} parent=355 // loop_pre_header
            _
          $region358: #{tpu_custom_call.1} parent=355 // loop_header
            %s818 = sphi 0, %s822
            %p819 = scmp.ge.s32.totalorder %s818, 1
            %s823 = sphi %s805, %s805
            %s824 = sphi %s806, %s806
          $region359: #{tpu_custom_call.1} parent=355 // loop_header_branch
            %821 = sbr.rel (%p819) target = $region363
          $region360: #{tpu_custom_call.1} parent=355 // loop_body
            %v825 = vld [vmem:[%s823] sm:%s816]
            %826 = vst [vmem:[%s824] sm:%s816] %v825
          $region361: #{tpu_custom_call.1} parent=355 // loop_footer
            %s822 = sadd.s32 1, %s818
          $region362: #{tpu_custom_call.1} parent=355 // loop_footer_branch
            %817 = sbr.rel target = $region358
          $region363: #{tpu_custom_call.1} parent=355 // loop_exit
            _
        $region356: #{tpu_custom_call.1} parent=43 // pred_fallthru
          _
        // Predicated region
        $region375: #{tpu_custom_call.1} parent=43 // pred_check
          _
        $region376: #{tpu_custom_call.1} parent=43 // pred_check_branch
          %851 = sbr.rel (0) target = $region378
        $region377: #{tpu_custom_call.1} parent=43 // pred_region
          %852 = vsyncadd [#allocation5], 16
        $region378: #{tpu_custom_call.1} parent=43 // pred_fallthru
          _
        %s853 = sadd.s32 %s298, 11
        %s854 = sld [smem:[#allocation7 + %s853]]
        %s855 = scalar_lea.vmem %s1, %s854
        %s856 = scalar_lea.vmem [#allocation3], 3
        %p858 = scmp.lt.u32.totalorder 1, 8
        %p859 = pneg %p858
        // Predicated region
        $region379: #{tpu_custom_call.1} parent=43 // pred_check
          _
        $region380: #{tpu_custom_call.1} parent=43 // pred_check_branch
          %861 = sbr.rel (%p858) target = $region382
        $region381: #{tpu_custom_call.1} parent=43 // pred_region
          %s877 = sand.u32 1, 7
          %p878 = scmp.eq.s32.totalorder %s877, 0
          %p879 = pneg %p878
          // Predicated region
          $region394: #{tpu_custom_call.1} parent=381 // pred_check
            _
          $region395: #{tpu_custom_call.1} parent=381 // pred_check_branch
            %881 = sbr.rel (%p878) target = $region397
          $region396: #{tpu_custom_call.1} parent=381 // pred_region
            %s882 = sand.u32 1, 7
            %s883 = ssub.s32 1, %s882
            %s884 = scalar_lea.vmem %s855, %s883
            %s885 = ssub.s32 1, %s882
            %s886 = scalar_lea.vmem %s856, %s885 [#allocation3]
            %s887 = sshll.u32 1, %s882
            %s888 = ssub.s32 %s887, 1
            loop: start=0, step=1, limit=1
            $region398: #{tpu_custom_call.1} parent=396 // loop_pre_header
              _
            $region399: #{tpu_custom_call.1} parent=396 // loop_header
              %s890 = sphi 0, %s894
              %p891 = scmp.ge.s32.totalorder %s890, 1
              %s895 = sphi %s884, %s884
              %s896 = sphi %s886, %s886
            $region400: #{tpu_custom_call.1} parent=396 // loop_header_branch
              %893 = sbr.rel (%p891) target = $region404
            $region401: #{tpu_custom_call.1} parent=396 // loop_body
              %v897 = vld [vmem:[%s895] sm:%s888]
              %898 = vst [vmem:[%s896] sm:%s888] %v897
            $region402: #{tpu_custom_call.1} parent=396 // loop_footer
              %s894 = sadd.s32 1, %s890
            $region403: #{tpu_custom_call.1} parent=396 // loop_footer_branch
              %889 = sbr.rel target = $region399
            $region404: #{tpu_custom_call.1} parent=396 // loop_exit
              _
          $region397: #{tpu_custom_call.1} parent=381 // pred_fallthru
            _
        $region382: #{tpu_custom_call.1} parent=43 // pred_fallthru
          _
        // Predicated region
        $region383: #{tpu_custom_call.1} parent=43 // pred_check
          %p862 = pneg %p858
        $region384: #{tpu_custom_call.1} parent=43 // pred_check_branch
          %864 = sbr.rel (%p862) target = $region386
        $region385: #{tpu_custom_call.1} parent=43 // pred_region
          %s865 = sshll.u32 1, 1
          %s866 = ssub.s32 %s865, 1
          loop: start=0, step=1, limit=1
          $region387: #{tpu_custom_call.1} parent=385 // loop_pre_header
            _
          $region388: #{tpu_custom_call.1} parent=385 // loop_header
            %s868 = sphi 0, %s872
            %p869 = scmp.ge.s32.totalorder %s868, 1
            %s873 = sphi %s855, %s855
            %s874 = sphi %s856, %s856
          $region389: #{tpu_custom_call.1} parent=385 // loop_header_branch
            %871 = sbr.rel (%p869) target = $region393
          $region390: #{tpu_custom_call.1} parent=385 // loop_body
            %v875 = vld [vmem:[%s873] sm:%s866]
            %876 = vst [vmem:[%s874] sm:%s866] %v875
          $region391: #{tpu_custom_call.1} parent=385 // loop_footer
            %s872 = sadd.s32 1, %s868
          $region392: #{tpu_custom_call.1} parent=385 // loop_footer_branch
            %867 = sbr.rel target = $region388
          $region393: #{tpu_custom_call.1} parent=385 // loop_exit
            _
        $region386: #{tpu_custom_call.1} parent=43 // pred_fallthru
          _
        // Predicated region
        $region405: #{tpu_custom_call.1} parent=43 // pred_check
          _
        $region406: #{tpu_custom_call.1} parent=43 // pred_check_branch
          %901 = sbr.rel (0) target = $region408
        $region407: #{tpu_custom_call.1} parent=43 // pred_region
          %902 = vsyncadd [#allocation5], 16
        $region408: #{tpu_custom_call.1} parent=43 // pred_fallthru
          _
        %s903 = sadd.s32 %s298, 12
        %s904 = sld [smem:[#allocation7 + %s903]]
        %s905 = scalar_lea.vmem %s1, %s904
        %s906 = scalar_lea.vmem [#allocation3], 4
        %p908 = scmp.lt.u32.totalorder 1, 8
        %p909 = pneg %p908
        // Predicated region
        $region409: #{tpu_custom_call.1} parent=43 // pred_check
          _
        $region410: #{tpu_custom_call.1} parent=43 // pred_check_branch
          %911 = sbr.rel (%p908) target = $region412
        $region411: #{tpu_custom_call.1} parent=43 // pred_region
          %s927 = sand.u32 1, 7
          %p928 = scmp.eq.s32.totalorder %s927, 0
          %p929 = pneg %p928
          // Predicated region
          $region424: #{tpu_custom_call.1} parent=411 // pred_check
            _
          $region425: #{tpu_custom_call.1} parent=411 // pred_check_branch
            %931 = sbr.rel (%p928) target = $region427
          $region426: #{tpu_custom_call.1} parent=411 // pred_region
            %s932 = sand.u32 1, 7
            %s933 = ssub.s32 1, %s932
            %s934 = scalar_lea.vmem %s905, %s933
            %s935 = ssub.s32 1, %s932
            %s936 = scalar_lea.vmem %s906, %s935 [#allocation3]
            %s937 = sshll.u32 1, %s932
            %s938 = ssub.s32 %s937, 1
            loop: start=0, step=1, limit=1
            $region428: #{tpu_custom_call.1} parent=426 // loop_pre_header
              _
            $region429: #{tpu_custom_call.1} parent=426 // loop_header
              %s940 = sphi 0, %s944
              %p941 = scmp.ge.s32.totalorder %s940, 1
              %s945 = sphi %s934, %s934
              %s946 = sphi %s936, %s936
            $region430: #{tpu_custom_call.1} parent=426 // loop_header_branch
              %943 = sbr.rel (%p941) target = $region434
            $region431: #{tpu_custom_call.1} parent=426 // loop_body
              %v947 = vld [vmem:[%s945] sm:%s938]
              %948 = vst [vmem:[%s946] sm:%s938] %v947
            $region432: #{tpu_custom_call.1} parent=426 // loop_footer
              %s944 = sadd.s32 1, %s940
            $region433: #{tpu_custom_call.1} parent=426 // loop_footer_branch
              %939 = sbr.rel target = $region429
            $region434: #{tpu_custom_call.1} parent=426 // loop_exit
              _
          $region427: #{tpu_custom_call.1} parent=411 // pred_fallthru
            _
        $region412: #{tpu_custom_call.1} parent=43 // pred_fallthru
          _
        // Predicated region
        $region413: #{tpu_custom_call.1} parent=43 // pred_check
          %p912 = pneg %p908
        $region414: #{tpu_custom_call.1} parent=43 // pred_check_branch
          %914 = sbr.rel (%p912) target = $region416
        $region415: #{tpu_custom_call.1} parent=43 // pred_region
          %s915 = sshll.u32 1, 1
          %s916 = ssub.s32 %s915, 1
          loop: start=0, step=1, limit=1
          $region417: #{tpu_custom_call.1} parent=415 // loop_pre_header
            _
          $region418: #{tpu_custom_call.1} parent=415 // loop_header
            %s918 = sphi 0, %s922
            %p919 = scmp.ge.s32.totalorder %s918, 1
            %s923 = sphi %s905, %s905
            %s924 = sphi %s906, %s906
          $region419: #{tpu_custom_call.1} parent=415 // loop_header_branch
            %921 = sbr.rel (%p919) target = $region423
          $region420: #{tpu_custom_call.1} parent=415 // loop_body
            %v925 = vld [vmem:[%s923] sm:%s916]
            %926 = vst [vmem:[%s924] sm:%s916] %v925
          $region421: #{tpu_custom_call.1} parent=415 // loop_footer
            %s922 = sadd.s32 1, %s918
          $region422: #{tpu_custom_call.1} parent=415 // loop_footer_branch
            %917 = sbr.rel target = $region418
          $region423: #{tpu_custom_call.1} parent=415 // loop_exit
            _
        $region416: #{tpu_custom_call.1} parent=43 // pred_fallthru
          _
        // Predicated region
        $region435: #{tpu_custom_call.1} parent=43 // pred_check
          _
        $region436: #{tpu_custom_call.1} parent=43 // pred_check_branch
          %951 = sbr.rel (0) target = $region438
        $region437: #{tpu_custom_call.1} parent=43 // pred_region
          %952 = vsyncadd [#allocation5], 16
        $region438: #{tpu_custom_call.1} parent=43 // pred_fallthru
          _
        %s953 = sadd.s32 %s298, 13
        %s954 = sld [smem:[#allocation7 + %s953]]
        %s955 = scalar_lea.vmem %s1, %s954
        %s956 = scalar_lea.vmem [#allocation3], 5
        %p958 = scmp.lt.u32.totalorder 1, 8
        %p959 = pneg %p958
        // Predicated region
        $region439: #{tpu_custom_call.1} parent=43 // pred_check
          _
        $region440: #{tpu_custom_call.1} parent=43 // pred_check_branch
          %961 = sbr.rel (%p958) target = $region442
        $region441: #{tpu_custom_call.1} parent=43 // pred_region
          %s977 = sand.u32 1, 7
          %p978 = scmp.eq.s32.totalorder %s977, 0
          %p979 = pneg %p978
          // Predicated region
          $region454: #{tpu_custom_call.1} parent=441 // pred_check
            _
          $region455: #{tpu_custom_call.1} parent=441 // pred_check_branch
            %981 = sbr.rel (%p978) target = $region457
          $region456: #{tpu_custom_call.1} parent=441 // pred_region
            %s982 = sand.u32 1, 7
            %s983 = ssub.s32 1, %s982
            %s984 = scalar_lea.vmem %s955, %s983
            %s985 = ssub.s32 1, %s982
            %s986 = scalar_lea.vmem %s956, %s985 [#allocation3]
            %s987 = sshll.u32 1, %s982
            %s988 = ssub.s32 %s987, 1
            loop: start=0, step=1, limit=1
            $region458: #{tpu_custom_call.1} parent=456 // loop_pre_header
              _
            $region459: #{tpu_custom_call.1} parent=456 // loop_header
              %s990 = sphi 0, %s994
              %p991 = scmp.ge.s32.totalorder %s990, 1
              %s995 = sphi %s984, %s984
              %s996 = sphi %s986, %s986
            $region460: #{tpu_custom_call.1} parent=456 // loop_header_branch
              %993 = sbr.rel (%p991) target = $region464
            $region461: #{tpu_custom_call.1} parent=456 // loop_body
              %v997 = vld [vmem:[%s995] sm:%s988]
              %998 = vst [vmem:[%s996] sm:%s988] %v997
            $region462: #{tpu_custom_call.1} parent=456 // loop_footer
              %s994 = sadd.s32 1, %s990
            $region463: #{tpu_custom_call.1} parent=456 // loop_footer_branch
              %989 = sbr.rel target = $region459
            $region464: #{tpu_custom_call.1} parent=456 // loop_exit
              _
          $region457: #{tpu_custom_call.1} parent=441 // pred_fallthru
            _
        $region442: #{tpu_custom_call.1} parent=43 // pred_fallthru
          _
        // Predicated region
        $region443: #{tpu_custom_call.1} parent=43 // pred_check
          %p962 = pneg %p958
        $region444: #{tpu_custom_call.1} parent=43 // pred_check_branch
          %964 = sbr.rel (%p962) target = $region446
        $region445: #{tpu_custom_call.1} parent=43 // pred_region
          %s965 = sshll.u32 1, 1
          %s966 = ssub.s32 %s965, 1
          loop: start=0, step=1, limit=1
          $region447: #{tpu_custom_call.1} parent=445 // loop_pre_header
            _
          $region448: #{tpu_custom_call.1} parent=445 // loop_header
            %s968 = sphi 0, %s972
            %p969 = scmp.ge.s32.totalorder %s968, 1
            %s973 = sphi %s955, %s955
            %s974 = sphi %s956, %s956
          $region449: #{tpu_custom_call.1} parent=445 // loop_header_branch
            %971 = sbr.rel (%p969) target = $region453
          $region450: #{tpu_custom_call.1} parent=445 // loop_body
            %v975 = vld [vmem:[%s973] sm:%s966]
            %976 = vst [vmem:[%s974] sm:%s966] %v975
          $region451: #{tpu_custom_call.1} parent=445 // loop_footer
            %s972 = sadd.s32 1, %s968
          $region452: #{tpu_custom_call.1} parent=445 // loop_footer_branch
            %967 = sbr.rel target = $region448
          $region453: #{tpu_custom_call.1} parent=445 // loop_exit
            _
        $region446: #{tpu_custom_call.1} parent=43 // pred_fallthru
          _
        // Predicated region
        $region465: #{tpu_custom_call.1} parent=43 // pred_check
          _
        $region466: #{tpu_custom_call.1} parent=43 // pred_check_branch
          %1001 = sbr.rel (0) target = $region468
        $region467: #{tpu_custom_call.1} parent=43 // pred_region
          %1002 = vsyncadd [#allocation5], 16
        $region468: #{tpu_custom_call.1} parent=43 // pred_fallthru
          _
        %s1003 = sadd.s32 %s298, 14
        %s1004 = sld [smem:[#allocation7 + %s1003]]
        %s1005 = scalar_lea.vmem %s1, %s1004
        %s1006 = scalar_lea.vmem [#allocation3], 6
        %p1008 = scmp.lt.u32.totalorder 1, 8
        %p1009 = pneg %p1008
        // Predicated region
        $region469: #{tpu_custom_call.1} parent=43 // pred_check
          _
        $region470: #{tpu_custom_call.1} parent=43 // pred_check_branch
          %1011 = sbr.rel (%p1008) target = $region472
        $region471: #{tpu_custom_call.1} parent=43 // pred_region
          %s1027 = sand.u32 1, 7
          %p1028 = scmp.eq.s32.totalorder %s1027, 0
          %p1029 = pneg %p1028
          // Predicated region
          $region484: #{tpu_custom_call.1} parent=471 // pred_check
            _
          $region485: #{tpu_custom_call.1} parent=471 // pred_check_branch
            %1031 = sbr.rel (%p1028) target = $region487
          $region486: #{tpu_custom_call.1} parent=471 // pred_region
            %s1032 = sand.u32 1, 7
            %s1033 = ssub.s32 1, %s1032
            %s1034 = scalar_lea.vmem %s1005, %s1033
            %s1035 = ssub.s32 1, %s1032
            %s1036 = scalar_lea.vmem %s1006, %s1035 [#allocation3]
            %s1037 = sshll.u32 1, %s1032
            %s1038 = ssub.s32 %s1037, 1
            loop: start=0, step=1, limit=1
            $region488: #{tpu_custom_call.1} parent=486 // loop_pre_header
              _
            $region489: #{tpu_custom_call.1} parent=486 // loop_header
              %s1040 = sphi 0, %s1044
              %p1041 = scmp.ge.s32.totalorder %s1040, 1
              %s1045 = sphi %s1034, %s1034
              %s1046 = sphi %s1036, %s1036
            $region490: #{tpu_custom_call.1} parent=486 // loop_header_branch
              %1043 = sbr.rel (%p1041) target = $region494
            $region491: #{tpu_custom_call.1} parent=486 // loop_body
              %v1047 = vld [vmem:[%s1045] sm:%s1038]
              %1048 = vst [vmem:[%s1046] sm:%s1038] %v1047
            $region492: #{tpu_custom_call.1} parent=486 // loop_footer
              %s1044 = sadd.s32 1, %s1040
            $region493: #{tpu_custom_call.1} parent=486 // loop_footer_branch
              %1039 = sbr.rel target = $region489
            $region494: #{tpu_custom_call.1} parent=486 // loop_exit
              _
          $region487: #{tpu_custom_call.1} parent=471 // pred_fallthru
            _
        $region472: #{tpu_custom_call.1} parent=43 // pred_fallthru
          _
        // Predicated region
        $region473: #{tpu_custom_call.1} parent=43 // pred_check
          %p1012 = pneg %p1008
        $region474: #{tpu_custom_call.1} parent=43 // pred_check_branch
          %1014 = sbr.rel (%p1012) target = $region476
        $region475: #{tpu_custom_call.1} parent=43 // pred_region
          %s1015 = sshll.u32 1, 1
          %s1016 = ssub.s32 %s1015, 1
          loop: start=0, step=1, limit=1
          $region477: #{tpu_custom_call.1} parent=475 // loop_pre_header
            _
          $region478: #{tpu_custom_call.1} parent=475 // loop_header
            %s1018 = sphi 0, %s1022
            %p1019 = scmp.ge.s32.totalorder %s1018, 1
            %s1023 = sphi %s1005, %s1005
            %s1024 = sphi %s1006, %s1006
          $region479: #{tpu_custom_call.1} parent=475 // loop_header_branch
            %1021 = sbr.rel (%p1019) target = $region483
          $region480: #{tpu_custom_call.1} parent=475 // loop_body
            %v1025 = vld [vmem:[%s1023] sm:%s1016]
            %1026 = vst [vmem:[%s1024] sm:%s1016] %v1025
          $region481: #{tpu_custom_call.1} parent=475 // loop_footer
            %s1022 = sadd.s32 1, %s1018
          $region482: #{tpu_custom_call.1} parent=475 // loop_footer_branch
            %1017 = sbr.rel target = $region478
          $region483: #{tpu_custom_call.1} parent=475 // loop_exit
            _
        $region476: #{tpu_custom_call.1} parent=43 // pred_fallthru
          _
        // Predicated region
        $region495: #{tpu_custom_call.1} parent=43 // pred_check
          _
        $region496: #{tpu_custom_call.1} parent=43 // pred_check_branch
          %1051 = sbr.rel (0) target = $region498
        $region497: #{tpu_custom_call.1} parent=43 // pred_region
          %1052 = vsyncadd [#allocation5], 16
        $region498: #{tpu_custom_call.1} parent=43 // pred_fallthru
          _
        %s1053 = sadd.s32 %s298, 15
        %s1054 = sld [smem:[#allocation7 + %s1053]]
        %s1055 = scalar_lea.vmem %s1, %s1054
        %s1056 = scalar_lea.vmem [#allocation3], 7
        %p1058 = scmp.lt.u32.totalorder 1, 8
        %p1059 = pneg %p1058
        // Predicated region
        $region499: #{tpu_custom_call.1} parent=43 // pred_check
          _
        $region500: #{tpu_custom_call.1} parent=43 // pred_check_branch
          %1061 = sbr.rel (%p1058) target = $region502
        $region501: #{tpu_custom_call.1} parent=43 // pred_region
          %s1077 = sand.u32 1, 7
          %p1078 = scmp.eq.s32.totalorder %s1077, 0
          %p1079 = pneg %p1078
          // Predicated region
          $region514: #{tpu_custom_call.1} parent=501 // pred_check
            _
          $region515: #{tpu_custom_call.1} parent=501 // pred_check_branch
            %1081 = sbr.rel (%p1078) target = $region517
          $region516: #{tpu_custom_call.1} parent=501 // pred_region
            %s1082 = sand.u32 1, 7
            %s1083 = ssub.s32 1, %s1082
            %s1084 = scalar_lea.vmem %s1055, %s1083
            %s1085 = ssub.s32 1, %s1082
            %s1086 = scalar_lea.vmem %s1056, %s1085 [#allocation3]
            %s1087 = sshll.u32 1, %s1082
            %s1088 = ssub.s32 %s1087, 1
            loop: start=0, step=1, limit=1
            $region518: #{tpu_custom_call.1} parent=516 // loop_pre_header
              _
            $region519: #{tpu_custom_call.1} parent=516 // loop_header
              %s1090 = sphi 0, %s1094
              %p1091 = scmp.ge.s32.totalorder %s1090, 1
              %s1095 = sphi %s1084, %s1084
              %s1096 = sphi %s1086, %s1086
            $region520: #{tpu_custom_call.1} parent=516 // loop_header_branch
              %1093 = sbr.rel (%p1091) target = $region524
            $region521: #{tpu_custom_call.1} parent=516 // loop_body
              %v1097 = vld [vmem:[%s1095] sm:%s1088]
              %1098 = vst [vmem:[%s1096] sm:%s1088] %v1097
            $region522: #{tpu_custom_call.1} parent=516 // loop_footer
              %s1094 = sadd.s32 1, %s1090
            $region523: #{tpu_custom_call.1} parent=516 // loop_footer_branch
              %1089 = sbr.rel target = $region519
            $region524: #{tpu_custom_call.1} parent=516 // loop_exit
              _
          $region517: #{tpu_custom_call.1} parent=501 // pred_fallthru
            _
        $region502: #{tpu_custom_call.1} parent=43 // pred_fallthru
          _
        // Predicated region
        $region503: #{tpu_custom_call.1} parent=43 // pred_check
          %p1062 = pneg %p1058
        $region504: #{tpu_custom_call.1} parent=43 // pred_check_branch
          %1064 = sbr.rel (%p1062) target = $region506
        $region505: #{tpu_custom_call.1} parent=43 // pred_region
          %s1065 = sshll.u32 1, 1
          %s1066 = ssub.s32 %s1065, 1
          loop: start=0, step=1, limit=1
          $region507: #{tpu_custom_call.1} parent=505 // loop_pre_header
            _
          $region508: #{tpu_custom_call.1} parent=505 // loop_header
            %s1068 = sphi 0, %s1072
            %p1069 = scmp.ge.s32.totalorder %s1068, 1
            %s1073 = sphi %s1055, %s1055
            %s1074 = sphi %s1056, %s1056
          $region509: #{tpu_custom_call.1} parent=505 // loop_header_branch
            %1071 = sbr.rel (%p1069) target = $region513
          $region510: #{tpu_custom_call.1} parent=505 // loop_body
            %v1075 = vld [vmem:[%s1073] sm:%s1066]
            %1076 = vst [vmem:[%s1074] sm:%s1066] %v1075
          $region511: #{tpu_custom_call.1} parent=505 // loop_footer
            %s1072 = sadd.s32 1, %s1068
          $region512: #{tpu_custom_call.1} parent=505 // loop_footer_branch
            %1067 = sbr.rel target = $region508
          $region513: #{tpu_custom_call.1} parent=505 // loop_exit
            _
        $region506: #{tpu_custom_call.1} parent=43 // pred_fallthru
          _
        // Predicated region
        $region525: #{tpu_custom_call.1} parent=43 // pred_check
          _
        $region526: #{tpu_custom_call.1} parent=43 // pred_check_branch
          %1101 = sbr.rel (0) target = $region528
        $region527: #{tpu_custom_call.1} parent=43 // pred_region
          %1102 = vsyncadd [#allocation5], 16
        $region528: #{tpu_custom_call.1} parent=43 // pred_fallthru
          _
        %v1103 = vld [vmem:[%s289] sm:$0xff]
        %1104 = vset.pattern.permute.xlu0 0
        %1105 = vperm.xlu0 %1104, %v1103
        %v1106 = vpop.permute.xlu0 %1105
        %vm1107 = vcmp.eq.s32.totalorder %v305, %v1106
        %v1108 = vsel %vm1107, 1, 0
        %v1109 = vcvt.s32.f32 %v1108
        %vm1110 = vcmask 195584
        %v1112 = vsel %vm1110, %v1109, 0
        %1114 = vmatprep.subr.mxu0 0.0
        %1115 = vmatpush1.msra.mxu0 0.0
        %1116 = vmatprep.subr.mxu0 0.0
        %1117 = vmatpush1.msra.mxu0 0.0
        %1118 = vmatprep.subr.mxu0 0.0
        %1119 = vmatpush1.msra.mxu0 0.0
        %1120 = vmatprep.subr.mxu0 0.0
        %1121 = vmatpush1.msra.mxu0 0.0
        %1122 = vmatprep.subr.mxu0 0.0
        %1123 = vmatpush1.msra.mxu0 0.0
        %1124 = vmatprep.subr.mxu0 0.0
        %1125 = vmatpush1.msra.mxu0 0.0
        %1126 = vmatprep.subr.mxu0 0.0
        %1127 = vmatpush1.msra.mxu0 0.0
        %1128 = vmatprep.subr.mxu0 0.0
        %1129 = vmatpush1.msra.mxu0 0.0
        %1130 = vmatprep.subr.mxu0 0.0
        %1131 = vmatpush1.msra.mxu0 0.0
        %1132 = vmatprep.subr.mxu0 0.0
        %1133 = vmatpush1.msra.mxu0 0.0
        %1134 = vmatprep.subr.mxu0 0.0
        %1135 = vmatpush1.msra.mxu0 0.0
        %1136 = vmatprep.subr.mxu0 0.0
        %1137 = vmatpush1.msra.mxu0 0.0
        %1138 = vmatprep.subr.mxu0 0.0
        %1139 = vmatpush1.msra.mxu0 0.0
        %1140 = vmatprep.subr.mxu0 0.0
        %1141 = vmatpush1.msra.mxu0 %v303
        %1142 = vmatprep.subr.mxu0 0.0
        %1143 = vmatpush1.msra.mxu0 %v302
        %1144 = vmatprep.subr.mxu0 0.0
        %1145 = vmatpush1.msra.mxu0 %v301
        %1146 = vmatprep.subr.mxu0 0.0
        %1147 = vmatpush2.msra.mxu0 0.0
        %1148 = vmatprep.subr.mxu0 0.0
        %1149 = vmatpush2.msra.mxu0 0.0
        %1150 = vmatprep.subr.mxu0 0.0
        %1151 = vmatpush2.msra.mxu0 0.0
        %1152 = vmatprep.subr.mxu0 0.0
        %1153 = vmatpush2.msra.mxu0 0.0
        %1154 = vmatprep.subr.mxu0 0.0
        %1155 = vmatpush2.msra.mxu0 0.0
        %1156 = vmatprep.subr.mxu0 0.0
        %1157 = vmatpush2.msra.mxu0 0.0
        %1158 = vmatprep.subr.mxu0 0.0
        %1159 = vmatpush2.msra.mxu0 0.0
        %1160 = vmatprep.subr.mxu0 0.0
        %1161 = vmatpush2.msra.mxu0 0.0
        %1162 = vmatprep.subr.mxu0 0.0
        %1163 = vmatpush2.msra.mxu0 0.0
        %1164 = vmatprep.subr.mxu0 0.0
        %1165 = vmatpush2.msra.mxu0 0.0
        %1166 = vmatprep.subr.mxu0 0.0
        %1167 = vmatpush2.msra.mxu0 0.0
        %1168 = vmatprep.subr.mxu0 0.0
        %1169 = vmatpush2.msra.mxu0 0.0
        %1170 = vmatprep.subr.mxu0 0.0
        %1171 = vmatpush2.msra.mxu0 0.0
        %1172 = vmatprep.subr.mxu0 0.0
        %1173 = vmatpush2.msra.mxu0 0.0
        %1174 = vmatprep.subr.mxu0 0.0
        %1175 = vmatpush2.msra.mxu0 0.0
        %1176 = vmatprep.subr.mxu0 0.0
        %1177 = vmatpush2.msra.mxu0 0.0
        %1178 = vmatprep.mubr.f32.mxu0 0.0
        %1179 = vmatmul.mubr.f32.gmra.mxu0 %v1112
        %v1180 = vpop.f32.mrf.mxu0
        %v1181 = vadd.f32 0.0, %v1180
        %v1182 = vpop.f32.mrf.mxu0
        %1183 = vdwg.mxu0
        %v1184 = vld [vmem:[%s295] sm:$0xff]
        %vm1185 = vcmp.eq.s32.totalorder %v1184, 0
        %v1186 = vld [vmem:[%s3] sm:$0x1]
        %v1187 = vlaneseq
        %v1188 = vshrl.u32 %v1187, 7
        %v1189 = vsub.s32 0, %v1188
        %v1190 = vrot.slane %v1186, %v1189
        %v1191 = vadd.f32 %v1181, %v1190
        %v1192 = vsel %vm1185, 1, 0
        %1193 = vset.pattern.permute.xlu0 0
        %1194 = vperm.xlu0 %1193, %v1192
        %v1195 = vpop.permute.xlu0 %1194
        %vm1196 = vcmp.eq.s32.totalorder %v1195, 1
        %v1197 = vsel %vm1196, %v1191, %v1181
        %vm1198 = vcmp.eq.s32.totalorder %v1184, 1
        %v1199 = vld [vmem:[%s3 + $0x1] sm:$0x1]
        %v1200 = vlaneseq
        %v1201 = vshrl.u32 %v1200, 7
        %v1202 = vsub.s32 0, %v1201
        %v1203 = vrot.slane %v1199, %v1202
        %v1204 = vadd.f32 %v1197, %v1203
        %v1205 = vsel %vm1198, 1, 0
        %1206 = vset.pattern.permute.xlu0 0
        %1207 = vperm.xlu0 %1206, %v1205
        %v1208 = vpop.permute.xlu0 %1207
        %vm1209 = vcmp.eq.s32.totalorder %v1208, 1
        %v1210 = vsel %vm1209, %v1204, %v1197
        %s1211 = smul.u32 1, 1
        %s1212 = sshll.u32 %s1211, 4
        %1213 = dma.done [#allocation4], %s1212
        %s1214 = sshll.u32 %s1211, 4
        %1215 = dma.done [#allocation4], %s1214
        %s1216 = sshll.u32 %s1211, 4
        %1217 = dma.done [#allocation4], %s1216
        %s1218 = sshll.u32 %s1211, 4
        %1219 = dma.done [#allocation4], %s1218
        %s1220 = sshll.u32 %s1211, 4
        %1221 = dma.done [#allocation4], %s1220
        %s1222 = sshll.u32 %s1211, 4
        %1223 = dma.done [#allocation4], %s1222
        %s1224 = sshll.u32 %s1211, 4
        %1225 = dma.done [#allocation4], %s1224
        %s1226 = sshll.u32 %s1211, 4
        %1227 = dma.done [#allocation4], %s1226
        %v1228 = vld [vmem:[#allocation2] sm:$0xff]
        %v1229 = vadd.f32 %v1228, %v1210
        %1230 = vadd.xlane.f32.xlu0 %v1229
        %v1231 = vpop.xlane.xlu0 %1230
        %v1232 = vrcp.pop 128.0
        %v1233 = vmul.f32 %v1231, %v1232
        %v1234 = vsub.f32 %v1229, %v1233
        %v1235 = vmul.f32 %v1234, %v1234
        %1236 = vadd.xlane.f32.xlu0 %v1235
        %v1237 = vpop.xlane.xlu0 %1236
        %v1238 = vmul.f32 %v1237, %v1232
        %v1239 = vadd.f32 %v1238, 1e-12
        %v1240 = vrsqrt.pop %v1239
        %v1241 = vmul.f32 %v1234, %v1240
        %v1243 = vlaneseq
        %v1244 = vshrl.u32 %v1243, 7
        %v1245 = vsub.s32 0, %v1244
        %v1246 = vrot.slane %v299, %v1245
        %v1248 = vmul.f32 %v1241, %v1246
        %v1250 = vlaneseq
        %v1251 = vshrl.u32 %v1250, 7
        %v1252 = vsub.s32 0, %v1251
        %v1253 = vrot.slane %v300, %v1252
        %v1255 = vadd.f32 %v1248, %v1253
        %1256 = vst [vmem:[%s284] sm:$0xff] %v1255
        %v1257 = vld [vmem:[%s289 + $0x8] sm:$0xff]
        %1258 = vset.pattern.permute.xlu0 0
        %1259 = vperm.xlu0 %1258, %v1257
        %v1260 = vpop.permute.xlu0 %1259
        %vm1261 = vcmp.eq.s32.totalorder %v305, %v1260
        %v1262 = vsel %vm1261, 1, 0
        %v1263 = vcvt.s32.f32 %v1262
        %v1265 = vsel %vm1110, %v1263, 0
        %1267 = vmatprep.subr.mxu0 0.0
        %1268 = vmatpush1.msra.mxu0 0.0
        %1269 = vmatprep.subr.mxu0 0.0
        %1270 = vmatpush1.msra.mxu0 0.0
        %1271 = vmatprep.subr.mxu0 0.0
        %1272 = vmatpush1.msra.mxu0 0.0
        %1273 = vmatprep.subr.mxu0 0.0
        %1274 = vmatpush1.msra.mxu0 0.0
        %1275 = vmatprep.subr.mxu0 0.0
        %1276 = vmatpush1.msra.mxu0 0.0
        %1277 = vmatprep.subr.mxu0 0.0
        %1278 = vmatpush1.msra.mxu0 0.0
        %1279 = vmatprep.subr.mxu0 0.0
        %1280 = vmatpush1.msra.mxu0 0.0
        %1281 = vmatprep.subr.mxu0 0.0
        %1282 = vmatpush1.msra.mxu0 0.0
        %1283 = vmatprep.subr.mxu0 0.0
        %1284 = vmatpush1.msra.mxu0 0.0
        %1285 = vmatprep.subr.mxu0 0.0
        %1286 = vmatpush1.msra.mxu0 0.0
        %1287 = vmatprep.subr.mxu0 0.0
        %1288 = vmatpush1.msra.mxu0 0.0
        %1289 = vmatprep.subr.mxu0 0.0
        %1290 = vmatpush1.msra.mxu0 0.0
        %1291 = vmatprep.subr.mxu0 0.0
        %1292 = vmatpush1.msra.mxu0 0.0
        %1293 = vmatprep.subr.mxu0 0.0
        %1294 = vmatpush1.msra.mxu0 %v303
        %1295 = vmatprep.subr.mxu0 0.0
        %1296 = vmatpush1.msra.mxu0 %v302
        %1297 = vmatprep.subr.mxu0 0.0
        %1298 = vmatpush1.msra.mxu0 %v301
        %1299 = vmatprep.subr.mxu0 0.0
        %1300 = vmatpush2.msra.mxu0 0.0
        %1301 = vmatprep.subr.mxu0 0.0
        %1302 = vmatpush2.msra.mxu0 0.0
        %1303 = vmatprep.subr.mxu0 0.0
        %1304 = vmatpush2.msra.mxu0 0.0
        %1305 = vmatprep.subr.mxu0 0.0
        %1306 = vmatpush2.msra.mxu0 0.0
        %1307 = vmatprep.subr.mxu0 0.0
        %1308 = vmatpush2.msra.mxu0 0.0
        %1309 = vmatprep.subr.mxu0 0.0
        %1310 = vmatpush2.msra.mxu0 0.0
        %1311 = vmatprep.subr.mxu0 0.0
        %1312 = vmatpush2.msra.mxu0 0.0
        %1313 = vmatprep.subr.mxu0 0.0
        %1314 = vmatpush2.msra.mxu0 0.0
        %1315 = vmatprep.subr.mxu0 0.0
        %1316 = vmatpush2.msra.mxu0 0.0
        %1317 = vmatprep.subr.mxu0 0.0
        %1318 = vmatpush2.msra.mxu0 0.0
        %1319 = vmatprep.subr.mxu0 0.0
        %1320 = vmatpush2.msra.mxu0 0.0
        %1321 = vmatprep.subr.mxu0 0.0
        %1322 = vmatpush2.msra.mxu0 0.0
        %1323 = vmatprep.subr.mxu0 0.0
        %1324 = vmatpush2.msra.mxu0 0.0
        %1325 = vmatprep.subr.mxu0 0.0
        %1326 = vmatpush2.msra.mxu0 0.0
        %1327 = vmatprep.subr.mxu0 0.0
        %1328 = vmatpush2.msra.mxu0 0.0
        %1329 = vmatprep.subr.mxu0 0.0
        %1330 = vmatpush2.msra.mxu0 0.0
        %1331 = vmatprep.mubr.f32.mxu0 0.0
        %1332 = vmatmul.mubr.f32.gmra.mxu0 %v1265
        %v1333 = vpop.f32.mrf.mxu0
        %v1334 = vadd.f32 0.0, %v1333
        %v1335 = vpop.f32.mrf.mxu0
        %1336 = vdwg.mxu0
        %v1337 = vld [vmem:[%s295 + $0x8] sm:$0xff]
        %vm1338 = vcmp.eq.s32.totalorder %v1337, 0
        %v1339 = vld [vmem:[%s3] sm:$0x1]
        %v1340 = vlaneseq
        %v1341 = vshrl.u32 %v1340, 7
        %v1342 = vsub.s32 0, %v1341
        %v1343 = vrot.slane %v1339, %v1342
        %v1344 = vadd.f32 %v1334, %v1343
        %v1345 = vsel %vm1338, 1, 0
        %1346 = vset.pattern.permute.xlu0 0
        %1347 = vperm.xlu0 %1346, %v1345
        %v1348 = vpop.permute.xlu0 %1347
        %vm1349 = vcmp.eq.s32.totalorder %v1348, 1
        %v1350 = vsel %vm1349, %v1344, %v1334
        %vm1351 = vcmp.eq.s32.totalorder %v1337, 1
        %v1352 = vld [vmem:[%s3 + $0x1] sm:$0x1]
        %v1353 = vlaneseq
        %v1354 = vshrl.u32 %v1353, 7
        %v1355 = vsub.s32 0, %v1354
        %v1356 = vrot.slane %v1352, %v1355
        %v1357 = vadd.f32 %v1350, %v1356
        %v1358 = vsel %vm1351, 1, 0
        %1359 = vset.pattern.permute.xlu0 0
        %1360 = vperm.xlu0 %1359, %v1358
        %v1361 = vpop.permute.xlu0 %1360
        %vm1362 = vcmp.eq.s32.totalorder %v1361, 1
        %v1363 = vsel %vm1362, %v1357, %v1350
        %s1364 = sshll.u32 %s1211, 4
        %1365 = dma.done [#allocation5], %s1364
        %s1366 = sshll.u32 %s1211, 4
        %1367 = dma.done [#allocation5], %s1366
        %s1368 = sshll.u32 %s1211, 4
        %1369 = dma.done [#allocation5], %s1368
        %s1370 = sshll.u32 %s1211, 4
        %1371 = dma.done [#allocation5], %s1370
        %s1372 = sshll.u32 %s1211, 4
        %1373 = dma.done [#allocation5], %s1372
        %s1374 = sshll.u32 %s1211, 4
        %1375 = dma.done [#allocation5], %s1374
        %s1376 = sshll.u32 %s1211, 4
        %1377 = dma.done [#allocation5], %s1376
        %s1378 = sshll.u32 %s1211, 4
        %1379 = dma.done [#allocation5], %s1378
        %v1380 = vld [vmem:[#allocation3] sm:$0xff]
        %v1381 = vadd.f32 %v1380, %v1363
        %1382 = vadd.xlane.f32.xlu0 %v1381
        %v1383 = vpop.xlane.xlu0 %1382
        %v1384 = vmul.f32 %v1383, %v1232
        %v1385 = vsub.f32 %v1381, %v1384
        %v1386 = vmul.f32 %v1385, %v1385
        %1387 = vadd.xlane.f32.xlu0 %v1386
        %v1388 = vpop.xlane.xlu0 %1387
        %v1389 = vmul.f32 %v1388, %v1232
        %v1390 = vadd.f32 %v1389, 1e-12
        %v1391 = vrsqrt.pop %v1390
        %v1392 = vmul.f32 %v1385, %v1391
        %v1393 = vmul.f32 %v1392, %v1246
        %v1394 = vadd.f32 %v1393, %v1253
        %1395 = vst [vmem:[%s284 + $0x8] sm:$0xff] %v1394
        %s1396 = sand.u32 %s173, 1
        %s1397 = scalar_lea.sflag [#allocation10], %s1396
        %s1398 = sand.u32 %s173, 1
        %s1399 = smul.addr %s1398, 16
        %s1400 = scalar_lea.vmem [#allocation11], %s1399
        // Predicated region
        $region529: #{tpu_custom_call.1} parent=43 // pred_check
          %p1401 = pneg %p183
        $region530: #{tpu_custom_call.1} parent=43 // pred_check_branch
          %1403 = sbr.rel (%p1401) target = $region532
        $region531: #{tpu_custom_call.1} parent=43 // pred_region
          %s1404 = smul.u32 2, %s29
          %s1406 = ssub.s32 256, 256
          %1407 = vsyncadd %s1397, %s1406
          %s1408 = smul.addr %s1404, 128
          %s1409 = scalar_lea.hbm %s8, %s1408
          %s1410 = sshll.u32 %s1400, 4
          %s1411 = int_to_ptr.vmem [resolvable:$true] %s1410
          %1416 = dma.vmem_to_hbm [thread:$0]  %s1411, 256, %s1409, %s1397, 128, 128, 8
        $region532: #{tpu_custom_call.1} parent=43 // pred_fallthru
          _
      $region44: #{tpu_custom_call.1} parent=5 // pred_fallthru
        _
      %p1417 = scmp.le.s32.totalorder 2, %s24
      // Predicated region
      $region533: #{tpu_custom_call.1} parent=5 // pred_check
        %p1418 = pneg %p1417
      $region534: #{tpu_custom_call.1} parent=5 // pred_check_branch
        %1420 = sbr.rel (%p1418) target = $region536
      $region535: #{tpu_custom_call.1} parent=5 // pred_region
        %s1421 = ssub.s32 %s24, 2
        // Predicated region
        $region537: #{tpu_custom_call.1} parent=535 // pred_check
          %p1422 = pneg %p189
        $region538: #{tpu_custom_call.1} parent=535 // pred_check_branch
          %1424 = sbr.rel (%p1422) target = $region540
        $region539: #{tpu_custom_call.1} parent=535 // pred_region
          %s1425 = sand.u32 %s174, 1
          %s1426 = scalar_lea.sflag [#allocation10], %s1425
          %s1427 = sand.u32 %s174, 1
          %s1428 = smul.addr %s1427, 16
          %s1429 = scalar_lea.vmem [#allocation11], %s1428
          %1430 = dma.done %s1426, 256
        $region540: #{tpu_custom_call.1} parent=535 // pred_fallthru
          _
      $region536: #{tpu_custom_call.1} parent=5 // pred_fallthru
        _
    $region6: #{tpu_custom_call.1} parent=1 // loop_footer
      %s28 = sadd.s32 1, %s24
    $region7: #{tpu_custom_call.1} parent=1 // loop_footer_branch
      %23 = sbr.rel target = $region3
    $region8: #{tpu_custom_call.1} parent=1 // loop_exit
      _
    %1431 = vsyncpa [#allocation9], 1
    %s1432 = scalar_lea.sflag [#allocation9], 1
    %1433 = vsyncpa %s1432, 1
    %1434 = vsyncpa [#allocation10], 1
    %s1435 = scalar_lea.sflag [#allocation10], 1
    %1436 = vsyncpa %s1435, 1
  %1437 = vsyncmov [#allocation4]
  %s1438 = vpop.sfrf %1437
  %p1439 = scmp.eq.s32.totalorder %s1438, 0
  %p1440 = pneg %p1439
  %1442 = shalt.err (%p1440)
  %1443 = vsyncmov [#allocation5]
  %s1444 = vpop.sfrf %1443
  %p1445 = scmp.eq.s32.totalorder %s1444, 0
  %p1446 = pneg %p1445
  %1448 = shalt.err (%p1446)

</llo_original>
